<compile_context>
chip_gen: v6e
topology: v6e:2x2x1
jax: 0.10.0
libtpu: 0.0.40
codegen_flags: <defaults>
</compile_context>

<pallas_src>
import functools

import jax
import jax.numpy as jnp
from jax.experimental import pallas as pl
from jax.experimental.pallas import tpu as pltpu

LANE = 128
SUBLANE = 8

_BLOCK_ROWS_MAX = 4096          # review: raise the 512 cap to 1024-4096
_VMEM_TILE_BUDGET = 24 << 20    # per-kernel working-set target (safe on all gens)
_VMEM_LIMIT_BYTES = 32 << 20    # scoped-VMEM limit for big tiles (>= v5e default,
                                # == v6e/v7x default, well under physical VMEM)
_VMEM_LIMIT_TRIGGER = 12 << 20  # only override the default limit above this


def _round_up(x, m):
    return ((x + m - 1) // m) * m


def _nbytes(a):
    return a.size * jnp.dtype(a.dtype).itemsize


def _pad_weight(w, rows, cols, dtype):
    r, c = w.shape
    return jnp.pad(w, ((0, rows - r), (0, cols - c))).astype(dtype)


def _pad_bias(b, cols):
    # Pad to lane multiple and replicate to 8 sublanes so the HBM->VMEM DMA is
    # a full (8, 128k) tile instead of a masked single-sublane transfer.
    b = jnp.asarray(b, jnp.float32).reshape(1, -1)
    b = jnp.pad(b, ((0, 0), (0, cols - b.shape[1])))
    return jnp.tile(b, (SUBLANE, 1))


# ----------------------------------------------------------------------------
# Kernels
# ----------------------------------------------------------------------------
def _emission_mlp_kernel(alpha_ref,                       # SMEM scalar (1,)
                         z_ref,
                         w1_ref, b1_ref, w2_ref, b2_ref,
                         w3_ref, b3_ref, w4_ref, b4_ref,
                         o_ref):
    """factorization=False: fc1..fc3 (bf16 weights) with PReLU, fc4 in f32."""
    a = alpha_ref[0]

    def prelu(x):                                         # f32 VPU math
        return jnp.where(x > 0, x, a * x)

    z = z_ref[...]
    if z.dtype != jnp.bfloat16:                           # static at trace time
        z = z.astype(jnp.bfloat16)

    b1 = b1_ref[0:1, :]
    b2 = b2_ref[0:1, :]
    b3 = b3_ref[0:1, :]
    b4 = b4_ref[0:1, :]

    h = jnp.dot(z, w1_ref[...], preferred_element_type=jnp.float32) + b1
    h = prelu(h)
    h = jnp.dot(h.astype(jnp.bfloat16), w2_ref[...],
                preferred_element_type=jnp.float32) + b2
    h = prelu(h)
    h = jnp.dot(h.astype(jnp.bfloat16), w3_ref[...],
                preferred_element_type=jnp.float32) + b3
    h = prelu(h)
    # Output layer in f32 (weights stored f32) to bound accumulated bf16 error.
    y = jnp.dot(h, w4_ref[...], preferred_element_type=jnp.float32) + b4

    o_ref[...] = y.astype(o_ref.dtype)


def _emission_fact_kernel(z_ref, w_ref, b_ref, o_ref):
    """factorization=True: single f32 linear."""
    z = z_ref[...]
    if z.dtype != w_ref.dtype:
        z = z.astype(w_ref.dtype)
    y = jnp.dot(z, w_ref[...], preferred_element_type=jnp.float32) + b_ref[0:1, :]
    o_ref[...] = y.astype(o_ref.dtype)


# ----------------------------------------------------------------------------
# One-time parameter preparation (lane-pad, cast hidden weights to bf16)
# ----------------------------------------------------------------------------
def prepare_emission_params(params, factorization=False):
    if factorization:
        W, b = params["fc_w"], params["fc_b"]
        F, D = W.shape
        Dp = _round_up(D, LANE)
        return {
            "fc_w": _pad_weight(W, F, Dp, jnp.float32),   # output layer: f32
            "fc_b": _pad_bias(b, Dp),
            "out_dim": int(D),
        }

    W1, b1 = params["fc1_w"], params["fc1_b"]
    W2, b2 = params["fc2_w"], params["fc2_b"]
    W3, b3 = params["fc3_w"], params["fc3_b"]
    W4, b4 = params["fc4_w"], params["fc4_b"]
    F, H = W1.shape
    D = W4.shape[1]
    # Keep padding targets at 128 multiples (NOT 256): larger M (block_rows),
    # not wider padding, is the MXU-utilization knob on 256-wide MXUs.
    Hp = _round_up(H, LANE)
    Dp = _round_up(D, LANE)

    alpha = jnp.asarray(params["prelu_a"], jnp.float32).reshape(-1)
    assert alpha.shape[0] == 1, "only single-parameter nn.PReLU() is supported"

    # Zero padding is exact: padded hidden units are 0, PReLU(0)=0, and the
    # corresponding (zero) rows of the next weight contribute nothing.
    return {
        "fc1_w": _pad_weight(W1, F, Hp, jnp.bfloat16),  "fc1_b": _pad_bias(b1, Hp),
        "fc2_w": _pad_weight(W2, Hp, Hp, jnp.bfloat16), "fc2_b": _pad_bias(b2, Hp),
        "fc3_w": _pad_weight(W3, Hp, Hp, jnp.bfloat16), "fc3_b": _pad_bias(b3, Hp),
        "fc4_w": _pad_weight(W4, Hp, Dp, jnp.float32),  "fc4_b": _pad_bias(b4, Dp),
        "prelu_a": alpha[:1],                           # (1,) f32 -> SMEM
        "out_dim": int(D),
    }


# ----------------------------------------------------------------------------
# Tiling policy (generation aware)
# ----------------------------------------------------------------------------
@functools.lru_cache(maxsize=1)
def _num_tensorcores():
    """Best-effort TensorCores-per-chip query; conservative fallback of 1."""
    try:
        info = pltpu.get_tpu_info()
        for name in ("num_tensorcores", "tensorcores_per_chip",
                     "num_cores_per_chip", "core_count", "num_cores"):
            v = getattr(info, name, None)
            if isinstance(v, int) and 0 < v <= 8:
                return v
    except Exception:
        pass
    try:
        kind = jax.devices()[0].device_kind.lower()
        if any(tag in kind for tag in ("v3", "v4", "v5p", "v7", "7x")):
            return 2
    except Exception:
        pass
    return 1


def _choose_block_rows(n_rows, per_row_bytes, resident_bytes):
    rows = _round_up(max(int(n_rows), 1), SUBLANE)
    budget = max(_VMEM_TILE_BUDGET - resident_bytes, SUBLANE * per_row_bytes)
    max_rows = (budget // max(per_row_bytes, 1)) // SUBLANE * SUBLANE
    max_rows = int(max(SUBLANE, min(_BLOCK_ROWS_MAX, max_rows)))

    n_tc = _num_tensorcores()
    if n_tc <= 1 or rows <= 256:
        # v5e/v6e (single TC): one tile as large as the VMEM budget allows;
        # extra grid steps only add per-step overhead.  Tiny batches keep the
        # single-tile fast path on every generation.
        return min(rows, max_rows)

    # v7x (2 TCs): force >= n_tc (and a multiple of n_tc) grid steps so the
    # "parallel" batch axis is actually sharded across TensorCores.
    tiles = max(n_tc, pl.cdiv(rows, max_rows))
    tiles = _round_up(tiles, n_tc)
    return max(SUBLANE, _round_up(pl.cdiv(rows, tiles), SUBLANE))


def _const_spec(shape, single_buffered):
    """BlockSpec for a grid-invariant (weight / bias) operand."""
    idx = lambda i: (0, 0)
    if single_buffered:
        # Fetched once, never revisited with a new index: double-buffering it
        # only burns VMEM headroom that larger batch tiles could use.
        return pl.BlockSpec(shape, idx, pipeline_mode=pl.Buffered(1))
    return pl.BlockSpec(shape, idx)


def _call_with_weight_buffering(build_and_run):
    """Prefer single-buffered weights; fall back to default double-buffering
    if this JAX build rejects pipeline_mode=pl.Buffered(1)."""
    try:
        return build_and_run(True)
    except Exception:
        return build_and_run(False)


# ----------------------------------------------------------------------------
# Wrapper
# ----------------------------------------------------------------------------
def emission_forward(z_t, prepared, factorization=False, block_rows=None,
                     out_dtype=jnp.float32, slice_output=True):
    """z_t: [..., factor_dim] (f32 or bf16).  Returns [..., D] in `out_dtype`
    (or padded [..., Dp] when slice_output=False, for downstream fused ops).

    Leading dims are flattened so e.g. a whole [T, B, F] sequence goes through
    one pallas_call (amortizes launch + pipeline warm-up over all timesteps).
    """
    lead = z_t.shape[:-1]
    F = z_t.shape[-1]
    z2 = z_t.reshape(-1, F)
    B = z2.shape[0]
    zs = jnp.dtype(z2.dtype).itemsize
    os_ = jnp.dtype(out_dtype).itemsize
    D = prepared["out_dim"]

    if factorization:
        W, b = prepared["fc_w"], prepared["fc_b"]
        Dp = W.shape[1]
        per_row = 2 * F * zs + 2 * Dp * os_ + Dp * 4
        resident = _nbytes(W) + _nbytes(b)
        if block_rows is None:
            block_rows = _choose_block_rows(B, per_row, 2 * resident)
        grid = (pl.cdiv(B, block_rows),)
        est = 2 * resident + block_rows * per_row
        cp = pltpu.CompilerParams(
            dimension_semantics=("parallel",),
            vmem_limit_bytes=_VMEM_LIMIT_BYTES if est > _VMEM_LIMIT_TRIGGER else None)

        def run(single_buffer_weights):
            return pl.pallas_call(
                _emission_fact_kernel,
                out_shape=jax.ShapeDtypeStruct((B, Dp), out_dtype),
                grid_spec=pl.GridSpec(
                    grid=grid,
                    in_specs=[
                        pl.BlockSpec((block_rows, F), lambda i: (i, 0)),
                        _const_spec(W.shape, single_buffer_weights),
                        _const_spec(b.shape, single_buffer_weights),
                    ],
                    out_specs=pl.BlockSpec((block_rows, Dp), lambda i: (i, 0)),
                ),
                compiler_params=cp,
            )(z2, W, b)

        out_p = _call_with_weight_buffering(run)

    else:
        W1, b1 = prepared["fc1_w"], prepared["fc1_b"]
        W2, b2 = prepared["fc2_w"], prepared["fc2_b"]
        W3, b3 = prepared["fc3_w"], prepared["fc3_b"]
        W4, b4 = prepared["fc4_w"], prepared["fc4_b"]
        alpha = prepared["prelu_a"]
        Hp = W2.shape[0]
        Dp = W4.shape[1]
        # Per-row VMEM: z tile + output tile (double-buffered) + ~3 live f32
        # activation slabs; weights/biases counted separately (resident).
        per_row = 2 * F * zs + 2 * Dp * os_ + 3 * Hp * 4
        resident = sum(_nbytes(a) for a in (W1, b1, W2, b2, W3, b3, W4, b4))
        if block_rows is None:
            block_rows = _choose_block_rows(B, per_row, 2 * resident)
        grid = (pl.cdiv(B, block_rows),)
        est = 2 * resident + block_rows * per_row
        cp = pltpu.CompilerParams(
            dimension_semantics=("parallel",),
            vmem_limit_bytes=_VMEM_LIMIT_BYTES if est > _VMEM_LIMIT_TRIGGER else None)

        def run(single_buffer_weights):
            return pl.pallas_call(
                _emission_mlp_kernel,
                out_shape=jax.ShapeDtypeStruct((B, Dp), out_dtype),
                grid_spec=pl.GridSpec(
                    grid=grid,
                    in_specs=[
                        pl.BlockSpec(memory_space=pltpu.MemorySpace.SMEM),  # alpha
                        pl.BlockSpec((block_rows, F), lambda i: (i, 0)),
                        _const_spec(W1.shape, single_buffer_weights),
                        _const_spec(b1.shape, single_buffer_weights),
                        _const_spec(W2.shape, single_buffer_weights),
                        _const_spec(b2.shape, single_buffer_weights),
                        _const_spec(W3.shape, single_buffer_weights),
                        _const_spec(b3.shape, single_buffer_weights),
                        _const_spec(W4.shape, single_buffer_weights),
                        _const_spec(b4.shape, single_buffer_weights),
                    ],
                    out_specs=pl.BlockSpec((block_rows, Dp), lambda i: (i, 0)),
                ),
                compiler_params=cp,
            )(alpha, z2, W1, b1, W2, b2, W3, b3, W4, b4)

        out_p = _call_with_weight_buffering(run)

    if slice_output and out_p.shape[-1] != D:
        out_p = out_p[:, :D]
    return out_p.reshape(lead + (out_p.shape[-1],))


# ----------------------------------------------------------------------------
# Deterministic parameter init (mimics PyTorch Linear default U(-1/sqrt(in), +))
# ----------------------------------------------------------------------------
def init_emission_params(key, factor_dim, D, factorization=False):
    def linear(key, fan_in, fan_out):
        kw, kb = jax.random.split(key)
        bound = 1.0 / jnp.sqrt(fan_in)
        # stored as [in, out] (already transposed vs. PyTorch's [out, in])
        W = jax.random.uniform(kw, (fan_in, fan_out), jnp.float32, -bound, bound)
        b = jax.random.uniform(kb, (1, fan_out), jnp.float32, -bound, bound)
        return W, b

    if factorization:
        W, b = linear(key, factor_dim, D)
        return {"fc_w": W, "fc_b": b}

    h = 2 * factor_dim
    k1, k2, k3, k4 = jax.random.split(key, 4)
    W1, b1 = linear(k1, factor_dim, h)
    W2, b2 = linear(k2, h, h)
    W3, b3 = linear(k3, h, h)
    W4, b4 = linear(k4, h, D)
    return {
        "fc1_w": W1, "fc1_b": b1,
        "fc2_w": W2, "fc2_b": b2,
        "fc3_w": W3, "fc3_b": b3,
        "fc4_w": W4, "fc4_b": b4,
        "prelu_a": jnp.full((1,), 0.25, jnp.float32),  # nn.PReLU() default
    }


# ----------------------------------------------------------------------------
# Reference mirroring the kernel numerics (bf16 hidden matmuls, f32 fc4)
# ----------------------------------------------------------------------------
def _reference_forward(z, p, factorization=False):
    hi = jax.lax.Precision.HIGHEST
    if factorization:
        return jnp.dot(z.astype(jnp.float32), p["fc_w"], precision=hi) + p["fc_b"]
    bf = jnp.bfloat16
    dotbf = lambda x, w: jnp.dot(x.astype(bf), w.astype(bf),
                                 preferred_element_type=jnp.float32)
    a = p["prelu_a"].reshape(-1)[0]
    prelu = lambda x: jnp.where(x > 0, x, a * x)
    h = prelu(dotbf(z, p["fc1_w"]) + p["fc1_b"])
    h = prelu(dotbf(h, p["fc2_w"]) + p["fc2_b"])
    h = prelu(dotbf(h, p["fc3_w"]) + p["fc3_b"])
    return jnp.dot(h, p["fc4_w"], precision=hi) + p["fc4_b"]


# ----------------------------------------------------------------------------
if __name__ == "__main__":
    key = jax.random.PRNGKey(0)
    k_param, k_param_f, k_data, k_data2 = jax.random.split(key, 4)

    factor_dim = 32
    D = 24
    T, B = 8, 16
    ATOL = 1e-3

    # --- factorization=False (4-layer MLP with PReLU), whole sequence fused ---
    params = init_emission_params(k_param, factor_dim, D, factorization=False)
    prepared = prepare_emission_params(params, factorization=False)

    z_seq = jax.random.normal(k_data, (T, B, factor_dim), jnp.float32)
    y = jax.block_until_ready(emission_forward(z_seq, prepared, factorization=False))
    y_ref = _reference_forward(z_seq.reshape(-1, factor_dim), params,
                               factorization=False).reshape(T, B, D)
    assert y.shape == (T, B, D)
    assert jnp.allclose(y, y_ref, atol=ATOL, rtol=ATOL), \
        float(jnp.max(jnp.abs(y - y_ref)))

    # --- same inputs, forced multi-tile grid (exercises the tiled path) ---
    y_mt = jax.block_until_ready(
        emission_forward(z_seq, prepared, factorization=False, block_rows=64))
    assert jnp.allclose(y_mt, y_ref, atol=ATOL, rtol=ATOL)

    # --- single timestep [B, F], bf16 producer (no wrapper-side cast) ---
    z_b = jax.random.normal(k_data2, (B, factor_dim), jnp.float32)
    z_bf = z_b.astype(jnp.bfloat16)
    y2 = jax.block_until_ready(emission_forward(z_bf, prepared, factorization=False))
    y2_ref = _reference_forward(z_bf.astype(jnp.float32), params, factorization=False)
    assert y2.shape == (B, D)
    assert jnp.allclose(y2, y2_ref, atol=ATOL, rtol=ATOL)

    # --- padded / bf16 output path (kept flowing to a downstream consumer) ---
    y3 = jax.block_until_ready(
        emission_forward(z_b, prepared, factorization=False,
                         out_dtype=jnp.bfloat16, slice_output=False))
    assert y3.shape[-1] % LANE == 0
    y3_ref = _reference_forward(z_b, params, factorization=False)
    assert jnp.allclose(y3[:, :D].astype(jnp.float32), y3_ref, atol=2e-2, rtol=2e-2)

    # --- factorization=True (single linear) ---
    params_f = init_emission_params(k_param_f, factor_dim, D, factorization=True)
    prepared_f = prepare_emission_params(params_f, factorization=True)
    y_f = jax.block_until_ready(emission_forward(z_b, prepared_f, factorization=True))
    y_f_ref = _reference_forward(z_b, params_f, factorization=True)
    assert y_f.shape == (B, D)
    assert jnp.allclose(y_f, y_f_ref, atol=ATOL, rtol=ATOL)

    print("KERNEL_OK")
</pallas_src>

<mosaic_0001>
module attributes {stable_mosaic.version = 11 : i64} {
  func.func @_emission_mlp_kernel(%arg0: i32, %arg1: memref<1xf32, #tpu.memory_space<smem>>, %arg2: memref<128x32xf32, #tpu.memory_space<vmem>>, %arg3: memref<32x128xbf16, #tpu.memory_space<vmem>>, %arg4: memref<8x128xf32, #tpu.memory_space<vmem>>, %arg5: memref<128x128xbf16, #tpu.memory_space<vmem>>, %arg6: memref<8x128xf32, #tpu.memory_space<vmem>>, %arg7: memref<128x128xbf16, #tpu.memory_space<vmem>>, %arg8: memref<8x128xf32, #tpu.memory_space<vmem>>, %arg9: memref<128x128xf32, #tpu.memory_space<vmem>>, %arg10: memref<8x128xf32, #tpu.memory_space<vmem>>, %arg11: memref<128x128xf32, #tpu.memory_space<vmem>>) attributes {dimension_semantics = [#tpu.dimension_semantics<parallel>], iteration_bounds = array<i64: 1>, scalar_prefetch = 0 : i64, scratch_operands = 0 : i64, tpu.core_type = #tpu.core_type<tc>, window_params = [{transform_indices = @transform_0, window_bounds = array<i64: 1>}, {transform_indices = @transform_1, window_bounds = array<i64: 128, 32>}, {pipeline_mode = #tpu.pipeline_mode<synchronous>, transform_indices = @transform_2, window_bounds = array<i64: 32, 128>}, {pipeline_mode = #tpu.pipeline_mode<synchronous>, transform_indices = @transform_3, window_bounds = array<i64: 8, 128>}, {pipeline_mode = #tpu.pipeline_mode<synchronous>, transform_indices = @transform_4, window_bounds = array<i64: 128, 128>}, {pipeline_mode = #tpu.pipeline_mode<synchronous>, transform_indices = @transform_5, window_bounds = array<i64: 8, 128>}, {pipeline_mode = #tpu.pipeline_mode<synchronous>, transform_indices = @transform_6, window_bounds = array<i64: 128, 128>}, {pipeline_mode = #tpu.pipeline_mode<synchronous>, transform_indices = @transform_7, window_bounds = array<i64: 8, 128>}, {pipeline_mode = #tpu.pipeline_mode<synchronous>, transform_indices = @transform_8, window_bounds = array<i64: 128, 128>}, {pipeline_mode = #tpu.pipeline_mode<synchronous>, transform_indices = @transform_9, window_bounds = array<i64: 8, 128>}, {transform_indices = @transform_10, window_bounds = array<i64: 128, 128>}]} {
    %c0 = arith.constant 0 : index
    %0 = memref.load %arg1[%c0] : memref<1xf32, #tpu.memory_space<smem>>
    %c0_0 = arith.constant 0 : index
    %c0_1 = arith.constant 0 : index
    %1 = vector.load %arg2[%c0_0, %c0_1] : memref<128x32xf32, #tpu.memory_space<vmem>>, vector<128x32xf32>
    %2 = arith.truncf %1 : vector<128x32xf32> to vector<128x32xbf16>
    %c0_2 = arith.constant 0 : index
    %c0_3 = arith.constant 0 : index
    %3 = vector.load %arg4[%c0_2, %c0_3] : memref<8x128xf32, #tpu.memory_space<vmem>>, vector<1x128xf32>
    %c0_4 = arith.constant 0 : index
    %c0_5 = arith.constant 0 : index
    %4 = vector.load %arg6[%c0_4, %c0_5] : memref<8x128xf32, #tpu.memory_space<vmem>>, vector<1x128xf32>
    %c0_6 = arith.constant 0 : index
    %c0_7 = arith.constant 0 : index
    %5 = vector.load %arg8[%c0_6, %c0_7] : memref<8x128xf32, #tpu.memory_space<vmem>>, vector<1x128xf32>
    %c0_8 = arith.constant 0 : index
    %c0_9 = arith.constant 0 : index
    %6 = vector.load %arg10[%c0_8, %c0_9] : memref<8x128xf32, #tpu.memory_space<vmem>>, vector<1x128xf32>
    %c0_10 = arith.constant 0 : index
    %c0_11 = arith.constant 0 : index
    %7 = vector.load %arg3[%c0_10, %c0_11] : memref<32x128xbf16, #tpu.memory_space<vmem>>, vector<32x128xbf16>
    %cst = arith.constant dense<0.000000e+00> : vector<128x128xf32>
    %8 = tpu.matmul %2, %7, %cst {dimension_numbers = #tpu.dot_dimension_numbers<[1], [0], [0], [1], [0, 0, 1, 1], [], []>} : vector<128x32xbf16>, vector<32x128xbf16>, vector<128x128xf32> -> vector<128x128xf32>
    %9 = vector.broadcast %3 : vector<1x128xf32> to vector<128x128xf32>
    %10 = arith.addf %8, %9 : vector<128x128xf32>
    %cst_12 = arith.constant 0.000000e+00 : f32
    %11 = vector.broadcast %cst_12 : f32 to vector<128x128xf32>
    %12 = arith.cmpf ogt, %10, %11 : vector<128x128xf32>
    %13 = vector.broadcast %0 : f32 to vector<128x128xf32>
    %14 = arith.mulf %13, %10 : vector<128x128xf32>
    %15 = arith.select %12, %10, %14 : vector<128x128xi1>, vector<128x128xf32>
    %16 = arith.truncf %15 : vector<128x128xf32> to vector<128x128xbf16>
    %c0_13 = arith.constant 0 : index
    %c0_14 = arith.constant 0 : index
    %17 = vector.load %arg5[%c0_13, %c0_14] : memref<128x128xbf16, #tpu.memory_space<vmem>>, vector<128x128xbf16>
    %cst_15 = arith.constant dense<0.000000e+00> : vector<128x128xf32>
    %18 = tpu.matmul %16, %17, %cst_15 {dimension_numbers = #tpu.dot_dimension_numbers<[1], [0], [0], [1], [0, 0, 1, 1], [], []>} : vector<128x128xbf16>, vector<128x128xbf16>, vector<128x128xf32> -> vector<128x128xf32>
    %19 = vector.broadcast %4 : vector<1x128xf32> to vector<128x128xf32>
    %20 = arith.addf %18, %19 : vector<128x128xf32>
    %cst_16 = arith.constant 0.000000e+00 : f32
    %21 = vector.broadcast %cst_16 : f32 to vector<128x128xf32>
    %22 = arith.cmpf ogt, %20, %21 : vector<128x128xf32>
    %23 = vector.broadcast %0 : f32 to vector<128x128xf32>
    %24 = arith.mulf %23, %20 : vector<128x128xf32>
    %25 = arith.select %22, %20, %24 : vector<128x128xi1>, vector<128x128xf32>
    %26 = arith.truncf %25 : vector<128x128xf32> to vector<128x128xbf16>
    %c0_17 = arith.constant 0 : index
    %c0_18 = arith.constant 0 : index
    %27 = vector.load %arg7[%c0_17, %c0_18] : memref<128x128xbf16, #tpu.memory_space<vmem>>, vector<128x128xbf16>
    %cst_19 = arith.constant dense<0.000000e+00> : vector<128x128xf32>
    %28 = tpu.matmul %26, %27, %cst_19 {dimension_numbers = #tpu.dot_dimension_numbers<[1], [0], [0], [1], [0, 0, 1, 1], [], []>} : vector<128x128xbf16>, vector<128x128xbf16>, vector<128x128xf32> -> vector<128x128xf32>
    %29 = vector.broadcast %5 : vector<1x128xf32> to vector<128x128xf32>
    %30 = arith.addf %28, %29 : vector<128x128xf32>
    %cst_20 = arith.constant 0.000000e+00 : f32
    %31 = vector.broadcast %cst_20 : f32 to vector<128x128xf32>
    %32 = arith.cmpf ogt, %30, %31 : vector<128x128xf32>
    %33 = vector.broadcast %0 : f32 to vector<128x128xf32>
    %34 = arith.mulf %33, %30 : vector<128x128xf32>
    %35 = arith.select %32, %30, %34 : vector<128x128xi1>, vector<128x128xf32>
    %c0_21 = arith.constant 0 : index
    %c0_22 = arith.constant 0 : index
    %36 = vector.load %arg9[%c0_21, %c0_22] : memref<128x128xf32, #tpu.memory_space<vmem>>, vector<128x128xf32>
    %cst_23 = arith.constant dense<0.000000e+00> : vector<128x128xf32>
    %37 = tpu.matmul %35, %36, %cst_23 {dimension_numbers = #tpu.dot_dimension_numbers<[1], [0], [0], [1], [0, 0, 1, 1], [], []>} : vector<128x128xf32>, vector<128x128xf32>, vector<128x128xf32> -> vector<128x128xf32>
    %38 = vector.broadcast %6 : vector<1x128xf32> to vector<128x128xf32>
    %39 = arith.addf %37, %38 : vector<128x128xf32>
    %c0_24 = arith.constant 0 : index
    %c0_25 = arith.constant 0 : index
    %40 = vector.load %arg11[%c0_24, %c0_25] : memref<128x128xf32, #tpu.memory_space<vmem>>, vector<128x128xf32>
    tpu.vector_store %arg11[%c0_24, %c0_25], %39 {strides = array<i32>} : memref<128x128xf32, #tpu.memory_space<vmem>>, vector<128x128xf32>,
    return
  }
  func.func @transform_0(%arg0: i32) -> i32 {
    %c0_i32 = arith.constant 0 : i32
    %c0_i32_0 = arith.constant 0 : i32
    return %c0_i32 : i32
  }
  func.func @transform_1(%arg0: i32) -> (i32, i32) {
    %c0_i32 = arith.constant 0 : i32
    %c0_i32_0 = arith.constant 0 : i32
    return %arg0, %c0_i32 : i32, i32
  }
  func.func @transform_2(%arg0: i32) -> (i32, i32) {
    %c0_i32 = arith.constant 0 : i32
    %c0_i32_0 = arith.constant 0 : i32
    %c0_i32_1 = arith.constant 0 : i32
    return %c0_i32, %c0_i32_0 : i32, i32
  }
  func.func @transform_3(%arg0: i32) -> (i32, i32) {
    %c0_i32 = arith.constant 0 : i32
    %c0_i32_0 = arith.constant 0 : i32
    %c0_i32_1 = arith.constant 0 : i32
    return %c0_i32, %c0_i32_0 : i32, i32
  }
  func.func @transform_4(%arg0: i32) -> (i32, i32) {
    %c0_i32 = arith.constant 0 : i32
    %c0_i32_0 = arith.constant 0 : i32
    %c0_i32_1 = arith.constant 0 : i32
    return %c0_i32, %c0_i32_0 : i32, i32
  }
  func.func @transform_5(%arg0: i32) -> (i32, i32) {
    %c0_i32 = arith.constant 0 : i32
    %c0_i32_0 = arith.constant 0 : i32
    %c0_i32_1 = arith.constant 0 : i32
    return %c0_i32, %c0_i32_0 : i32, i32
  }
  func.func @transform_6(%arg0: i32) -> (i32, i32) {
    %c0_i32 = arith.constant 0 : i32
    %c0_i32_0 = arith.constant 0 : i32
    %c0_i32_1 = arith.constant 0 : i32
    return %c0_i32, %c0_i32_0 : i32, i32
  }
  func.func @transform_7(%arg0: i32) -> (i32, i32) {
    %c0_i32 = arith.constant 0 : i32
    %c0_i32_0 = arith.constant 0 : i32
    %c0_i32_1 = arith.constant 0 : i32
    return %c0_i32, %c0_i32_0 : i32, i32
  }
  func.func @transform_8(%arg0: i32) -> (i32, i32) {
    %c0_i32 = arith.constant 0 : i32
    %c0_i32_0 = arith.constant 0 : i32
    %c0_i32_1 = arith.constant 0 : i32
    return %c0_i32, %c0_i32_0 : i32, i32
  }
  func.func @transform_9(%arg0: i32) -> (i32, i32) {
    %c0_i32 = arith.constant 0 : i32
    %c0_i32_0 = arith.constant 0 : i32
    %c0_i32_1 = arith.constant 0 : i32
    return %c0_i32, %c0_i32_0 : i32, i32
  }
  func.func @transform_10(%arg0: i32) -> (i32, i32) {
    %c0_i32 = arith.constant 0 : i32
    %c0_i32_0 = arith.constant 0 : i32
    return %arg0, %c0_i32 : i32, i32
  }
}

module attributes {stable_mosaic.version = 11 : i64} {
  func.func @_emission_mlp_kernel(%arg0: i32, %arg1: memref<1xf32, #tpu.memory_space<smem>>, %arg2: memref<128x32xf32, #tpu.memory_space<vmem>>, %arg3: memref<32x128xbf16, #tpu.memory_space<vmem>>, %arg4: memref<8x128xf32, #tpu.memory_space<vmem>>, %arg5: memref<128x128xbf16, #tpu.memory_space<vmem>>, %arg6: memref<8x128xf32, #tpu.memory_space<vmem>>, %arg7: memref<128x128xbf16, #tpu.memory_space<vmem>>, %arg8: memref<8x128xf32, #tpu.memory_space<vmem>>, %arg9: memref<128x128xf32, #tpu.memory_space<vmem>>, %arg10: memref<8x128xf32, #tpu.memory_space<vmem>>, %arg11: memref<128x128xf32, #tpu.memory_space<vmem>>) attributes {dimension_semantics = [#tpu.dimension_semantics<parallel>], iteration_bounds = array<i64: 1>, scalar_prefetch = 0 : i64, scratch_operands = 0 : i64, tpu.core_type = #tpu.core_type<tc>, window_params = [{transform_indices = @transform_0, window_bounds = array<i64: 1>}, {transform_indices = @transform_1, window_bounds = array<i64: 128, 32>}, {pipeline_mode = #tpu.pipeline_mode<synchronous>, transform_indices = @transform_2, window_bounds = array<i64: 32, 128>}, {pipeline_mode = #tpu.pipeline_mode<synchronous>, transform_indices = @transform_3, window_bounds = array<i64: 8, 128>}, {pipeline_mode = #tpu.pipeline_mode<synchronous>, transform_indices = @transform_4, window_bounds = array<i64: 128, 128>}, {pipeline_mode = #tpu.pipeline_mode<synchronous>, transform_indices = @transform_5, window_bounds = array<i64: 8, 128>}, {pipeline_mode = #tpu.pipeline_mode<synchronous>, transform_indices = @transform_6, window_bounds = array<i64: 128, 128>}, {pipeline_mode = #tpu.pipeline_mode<synchronous>, transform_indices = @transform_7, window_bounds = array<i64: 8, 128>}, {pipeline_mode = #tpu.pipeline_mode<synchronous>, transform_indices = @transform_8, window_bounds = array<i64: 128, 128>}, {pipeline_mode = #tpu.pipeline_mode<synchronous>, transform_indices = @transform_9, window_bounds = array<i64: 8, 128>}, {transform_indices = @transform_10, window_bounds = array<i64: 128, 128>}]} {
    %c0 = arith.constant 0 : index
    %0 = memref.load %arg1[%c0] : memref<1xf32, #tpu.memory_space<smem>>
    %c0_0 = arith.constant 0 : index
    %c0_1 = arith.constant 0 : index
    %1 = vector.load %arg2[%c0_0, %c0_1] : memref<128x32xf32, #tpu.memory_space<vmem>>, vector<128x32xf32>
    %2 = arith.truncf %1 : vector<128x32xf32> to vector<128x32xbf16>
    %c0_2 = arith.constant 0 : index
    %c0_3 = arith.constant 0 : index
    %3 = vector.load %arg4[%c0_2, %c0_3] : memref<8x128xf32, #tpu.memory_space<vmem>>, vector<1x128xf32>
    %c0_4 = arith.constant 0 : index
    %c0_5 = arith.constant 0 : index
    %4 = vector.load %arg6[%c0_4, %c0_5] : memref<8x128xf32, #tpu.memory_space<vmem>>, vector<1x128xf32>
    %c0_6 = arith.constant 0 : index
    %c0_7 = arith.constant 0 : index
    %5 = vector.load %arg8[%c0_6, %c0_7] : memref<8x128xf32, #tpu.memory_space<vmem>>, vector<1x128xf32>
    %c0_8 = arith.constant 0 : index
    %c0_9 = arith.constant 0 : index
    %6 = vector.load %arg10[%c0_8, %c0_9] : memref<8x128xf32, #tpu.memory_space<vmem>>, vector<1x128xf32>
    %c0_10 = arith.constant 0 : index
    %c0_11 = arith.constant 0 : index
    %7 = vector.load %arg3[%c0_10, %c0_11] : memref<32x128xbf16, #tpu.memory_space<vmem>>, vector<32x128xbf16>
    %cst = arith.constant dense<0.000000e+00> : vector<128x128xf32>
    %8 = tpu.matmul %2, %7, %cst {dimension_numbers = #tpu.dot_dimension_numbers<[1], [0], [0], [1], [0, 0, 1, 1], [], []>} : vector<128x32xbf16>, vector<32x128xbf16>, vector<128x128xf32> -> vector<128x128xf32>
    %9 = vector.broadcast %3 : vector<1x128xf32> to vector<128x128xf32>
    %10 = arith.addf %8, %9 : vector<128x128xf32>
    %cst_12 = arith.constant 0.000000e+00 : f32
    %11 = vector.broadcast %cst_12 : f32 to vector<128x128xf32>
    %12 = arith.cmpf ogt, %10, %11 : vector<128x128xf32>
    %13 = vector.broadcast %0 : f32 to vector<128x128xf32>
    %14 = arith.mulf %13, %10 : vector<128x128xf32>
    %15 = arith.select %12, %10, %14 : vector<128x128xi1>, vector<128x128xf32>
    %16 = arith.truncf %15 : vector<128x128xf32> to vector<128x128xbf16>
    %c0_13 = arith.constant 0 : index
    %c0_14 = arith.constant 0 : index
    %17 = vector.load %arg5[%c0_13, %c0_14] : memref<128x128xbf16, #tpu.memory_space<vmem>>, vector<128x128xbf16>
    %cst_15 = arith.constant dense<0.000000e+00> : vector<128x128xf32>
    %18 = tpu.matmul %16, %17, %cst_15 {dimension_numbers = #tpu.dot_dimension_numbers<[1], [0], [0], [1], [0, 0, 1, 1], [], []>} : vector<128x128xbf16>, vector<128x128xbf16>, vector<128x128xf32> -> vector<128x128xf32>
    %19 = vector.broadcast %4 : vector<1x128xf32> to vector<128x128xf32>
    %20 = arith.addf %18, %19 : vector<128x128xf32>
    %cst_16 = arith.constant 0.000000e+00 : f32
    %21 = vector.broadcast %cst_16 : f32 to vector<128x128xf32>
    %22 = arith.cmpf ogt, %20, %21 : vector<128x128xf32>
    %23 = vector.broadcast %0 : f32 to vector<128x128xf32>
    %24 = arith.mulf %23, %20 : vector<128x128xf32>
    %25 = arith.select %22, %20, %24 : vector<128x128xi1>, vector<128x128xf32>
    %26 = arith.truncf %25 : vector<128x128xf32> to vector<128x128xbf16>
    %c0_17 = arith.constant 0 : index
    %c0_18 = arith.constant 0 : index
    %27 = vector.load %arg7[%c0_17, %c0_18] : memref<128x128xbf16, #tpu.memory_space<vmem>>, vector<128x128xbf16>
    %cst_19 = arith.constant dense<0.000000e+00> : vector<128x128xf32>
    %28 = tpu.matmul %26, %27, %cst_19 {dimension_numbers = #tpu.dot_dimension_numbers<[1], [0], [0], [1], [0, 0, 1, 1], [], []>} : vector<128x128xbf16>, vector<128x128xbf16>, vector<128x128xf32> -> vector<128x128xf32>
    %29 = vector.broadcast %5 : vector<1x128xf32> to vector<128x128xf32>
    %30 = arith.addf %28, %29 : vector<128x128xf32>
    %cst_20 = arith.constant 0.000000e+00 : f32
    %31 = vector.broadcast %cst_20 : f32 to vector<128x128xf32>
    %32 = arith.cmpf ogt, %30, %31 : vector<128x128xf32>
    %33 = vector.broadcast %0 : f32 to vector<128x128xf32>
    %34 = arith.mulf %33, %30 : vector<128x128xf32>
    %35 = arith.select %32, %30, %34 : vector<128x128xi1>, vector<128x128xf32>
    %c0_21 = arith.constant 0 : index
    %c0_22 = arith.constant 0 : index
    %36 = vector.load %arg9[%c0_21, %c0_22] : memref<128x128xf32, #tpu.memory_space<vmem>>, vector<128x128xf32>
    %cst_23 = arith.constant dense<0.000000e+00> : vector<128x128xf32>
    %37 = tpu.matmul %35, %36, %cst_23 {dimension_numbers = #tpu.dot_dimension_numbers<[1], [0], [0], [1], [0, 0, 1, 1], [], []>} : vector<128x128xf32>, vector<128x128xf32>, vector<128x128xf32> -> vector<128x128xf32>
    %38 = vector.broadcast %6 : vector<1x128xf32> to vector<128x128xf32>
    %39 = arith.addf %37, %38 : vector<128x128xf32>
    %c0_24 = arith.constant 0 : index
    %c0_25 = arith.constant 0 : index
    %40 = vector.load %arg11[%c0_24, %c0_25] : memref<128x128xf32, #tpu.memory_space<vmem>>, vector<128x128xf32>
    tpu.vector_store %arg11[%c0_24, %c0_25], %39 {strides = array<i32>} : memref<128x128xf32, #tpu.memory_space<vmem>>, vector<128x128xf32>,
    return
  }
  func.func @transform_0(%arg0: i32) -> i32 {
    %c0_i32 = arith.constant 0 : i32
    %c0_i32_0 = arith.constant 0 : i32
    return %c0_i32 : i32
  }
  func.func @transform_1(%arg0: i32) -> (i32, i32) {
    %c0_i32 = arith.constant 0 : i32
    %c0_i32_0 = arith.constant 0 : i32
    return %arg0, %c0_i32 : i32, i32
  }
  func.func @transform_2(%arg0: i32) -> (i32, i32) {
    %c0_i32 = arith.constant 0 : i32
    %c0_i32_0 = arith.constant 0 : i32
    %c0_i32_1 = arith.constant 0 : i32
    return %c0_i32, %c0_i32_0 : i32, i32
  }
  func.func @transform_3(%arg0: i32) -> (i32, i32) {
    %c0_i32 = arith.constant 0 : i32
    %c0_i32_0 = arith.constant 0 : i32
    %c0_i32_1 = arith.constant 0 : i32
    return %c0_i32, %c0_i32_0 : i32, i32
  }
  func.func @transform_4(%arg0: i32) -> (i32, i32) {
    %c0_i32 = arith.constant 0 : i32
    %c0_i32_0 = arith.constant 0 : i32
    %c0_i32_1 = arith.constant 0 : i32
    return %c0_i32, %c0_i32_0 : i32, i32
  }
  func.func @transform_5(%arg0: i32) -> (i32, i32) {
    %c0_i32 = arith.constant 0 : i32
    %c0_i32_0 = arith.constant 0 : i32
    %c0_i32_1 = arith.constant 0 : i32
    return %c0_i32, %c0_i32_0 : i32, i32
  }
  func.func @transform_6(%arg0: i32) -> (i32, i32) {
    %c0_i32 = arith.constant 0 : i32
    %c0_i32_0 = arith.constant 0 : i32
    %c0_i32_1 = arith.constant 0 : i32
    return %c0_i32, %c0_i32_0 : i32, i32
  }
  func.func @transform_7(%arg0: i32) -> (i32, i32) {
    %c0_i32 = arith.constant 0 : i32
    %c0_i32_0 = arith.constant 0 : i32
    %c0_i32_1 = arith.constant 0 : i32
    return %c0_i32, %c0_i32_0 : i32, i32
  }
  func.func @transform_8(%arg0: i32) -> (i32, i32) {
    %c0_i32 = arith.constant 0 : i32
    %c0_i32_0 = arith.constant 0 : i32
    %c0_i32_1 = arith.constant 0 : i32
    return %c0_i32, %c0_i32_0 : i32, i32
  }
  func.func @transform_9(%arg0: i32) -> (i32, i32) {
    %c0_i32 = arith.constant 0 : i32
    %c0_i32_0 = arith.constant 0 : i32
    %c0_i32_1 = arith.constant 0 : i32
    return %c0_i32, %c0_i32_0 : i32, i32
  }
  func.func @transform_10(%arg0: i32) -> (i32, i32) {
    %c0_i32 = arith.constant 0 : i32
    %c0_i32_0 = arith.constant 0 : i32
    return %arg0, %c0_i32 : i32, i32
  }
}

</mosaic_0001>

<llo_original>
// kernel: tpu_custom_call.1
$region0: #{tpu_custom_call.1}
  #allocation0 [shape = 'u32[]', space=smem, size = 0x4, offset = 0x4, fixed_abs, tag = 'smem constant byte address 0x4 - core index']
  #allocation1 [shape = 'u32[144,128]{1,0:T(1,128)}', space=vmem, size = 0x12000, scoped, tag = 'internal scratch']
  #allocation2 [shape = 'f32[1]{0:T(128)S(6)}', space=smem, size = 0x200, scoped, tag = 'scoped memory for tpu_custom_call.1']
  %s0 = inlined_call_operand.<no memory space> [shape: f32[1], index: 0, kind: input, shape index: {}]
  %s1 = inlined_call_operand.vmem [shape: f32[128,32], index: 1, kind: input, shape index: {}]
  %s2 = inlined_call_operand.vmem [shape: bf16[32,128], index: 2, kind: input, shape index: {}]
  %s3 = inlined_call_operand.vmem [shape: f32[8,128], index: 3, kind: input, shape index: {}]
  %s4 = inlined_call_operand.hbm [shape: bf16[128,128], index: 4, kind: input, shape index: {}]
  %s5 = inlined_call_operand.vmem [shape: f32[8,128], index: 5, kind: input, shape index: {}]
  %s6 = inlined_call_operand.hbm [shape: bf16[128,128], index: 6, kind: input, shape index: {}]
  %s7 = inlined_call_operand.vmem [shape: f32[8,128], index: 7, kind: input, shape index: {}]
  %s8 = inlined_call_operand.vmem [shape: f32[128,128], index: 8, kind: input, shape index: {}]
  %s9 = inlined_call_operand.vmem [shape: f32[8,128], index: 9, kind: input, shape index: {}]
  %s10 = inlined_call_operand.hbm [shape: f32[128,128], index: 10, kind: output, shape index: {}]
  %s11 = sld [smem:[#allocation0]]
  $region58: #{tpu_custom_call.1} parent=0
    _
  %s13 = ssub.s32 1, %s11
  %s14 = scalar_select 0, %s13, %s11
  %15 = sst [smem:[#allocation2]] %s0
  $region1: #{tpu_custom_call.1} parent=0
    #allocation3 [shape = 'u8[32768]{0}', space=vmem, size = 0x8000, scoped, tag = 'input window, operand 4, single buffered']
    #allocation4 [shape = 's32[1]{0}', space=sflag, size = 0x4, scoped, tag = 'scoped memory for tpu_custom_call.1']
    #allocation5 [shape = 's32[1]{0}', space=sflag, size = 0x4, scoped, tag = 'scoped memory for tpu_custom_call.1']
    #allocation6 [shape = 'u8[32768]{0}', space=vmem, size = 0x8000, scoped, tag = 'input window, operand 6, single buffered']
    #allocation7 [shape = 's32[1]{0}', space=sflag, size = 0x4, scoped, tag = 'scoped memory for tpu_custom_call.1']
    #allocation8 [shape = 'u8[65536]{0}', space=vmem, size = 0x10000, scoped, tag = 'output window, operand 0, single buffered']
    %16 = vsyncpa [#allocation4], 0
    %17 = vsyncpa [#allocation7], 0
    %18 = vsyncpa [#allocation5], 0
    // Predicated region
    $region2: #{tpu_custom_call.1} parent=1 // pred_check
      _
    $region3: #{tpu_custom_call.1} parent=1 // pred_check_branch
      %20 = sbr.rel (0) target = $region5
    $region4: #{tpu_custom_call.1} parent=1 // pred_region
      _
    $region5: #{tpu_custom_call.1} parent=1 // pred_fallthru
      _
    // Predicated region
    $region6: #{tpu_custom_call.1} parent=1 // pred_check
      _
    $region7: #{tpu_custom_call.1} parent=1 // pred_check_branch
      %22 = sbr.rel (0) target = $region9
    $region8: #{tpu_custom_call.1} parent=1 // pred_region
      _
    $region9: #{tpu_custom_call.1} parent=1 // pred_fallthru
      _
    // Predicated region
    $region10: #{tpu_custom_call.1} parent=1 // pred_check
      _
    $region11: #{tpu_custom_call.1} parent=1 // pred_check_branch
      %24 = sbr.rel (0) target = $region13
    $region12: #{tpu_custom_call.1} parent=1 // pred_region
      _
    $region13: #{tpu_custom_call.1} parent=1 // pred_fallthru
      _
    // Predicated region
    $region14: #{tpu_custom_call.1} parent=1 // pred_check
      _
    $region15: #{tpu_custom_call.1} parent=1 // pred_check_branch
      %26 = sbr.rel (0) target = $region17
    $region16: #{tpu_custom_call.1} parent=1 // pred_region
      _
    $region17: #{tpu_custom_call.1} parent=1 // pred_fallthru
      _
    // Predicated region
    $region18: #{tpu_custom_call.1} parent=1 // pred_check
      _
    $region19: #{tpu_custom_call.1} parent=1 // pred_check_branch
      %28 = sbr.rel (0) target = $region21
    $region20: #{tpu_custom_call.1} parent=1 // pred_region
      %s30 = ssub.s32 1024, 1024
      %31 = vsyncadd [#allocation4], %s30
      %s32 = sshll.u32 [#allocation3], 4
      %s33 = int_to_ptr.vmem [resolvable:$true] %s32
      %38 = dma.hbm_to_vmem [thread:$0]  %s4, 1024, %s33, [#allocation4], 64, 64, 4
    $region21: #{tpu_custom_call.1} parent=1 // pred_fallthru
      _
    // Predicated region
    $region22: #{tpu_custom_call.1} parent=1 // pred_check
      _
    $region23: #{tpu_custom_call.1} parent=1 // pred_check_branch
      %40 = sbr.rel (0) target = $region25
    $region24: #{tpu_custom_call.1} parent=1 // pred_region
      _
    $region25: #{tpu_custom_call.1} parent=1 // pred_fallthru
      _
    // Predicated region
    $region26: #{tpu_custom_call.1} parent=1 // pred_check
      _
    $region27: #{tpu_custom_call.1} parent=1 // pred_check_branch
      %42 = sbr.rel (0) target = $region29
    $region28: #{tpu_custom_call.1} parent=1 // pred_region
      %s44 = ssub.s32 1024, 1024
      %45 = vsyncadd [#allocation7], %s44
      %s46 = sshll.u32 [#allocation6], 4
      %s47 = int_to_ptr.vmem [resolvable:$true] %s46
      %52 = dma.hbm_to_vmem [thread:$0]  %s6, 1024, %s47, [#allocation7], 64, 64, 4
    $region29: #{tpu_custom_call.1} parent=1 // pred_fallthru
      _
    // Predicated region
    $region30: #{tpu_custom_call.1} parent=1 // pred_check
      _
    $region31: #{tpu_custom_call.1} parent=1 // pred_check_branch
      %54 = sbr.rel (0) target = $region33
    $region32: #{tpu_custom_call.1} parent=1 // pred_region
      _
    $region33: #{tpu_custom_call.1} parent=1 // pred_fallthru
      _
    // Predicated region
    $region34: #{tpu_custom_call.1} parent=1 // pred_check
      _
    $region35: #{tpu_custom_call.1} parent=1 // pred_check_branch
      %56 = sbr.rel (0) target = $region37
    $region36: #{tpu_custom_call.1} parent=1 // pred_region
      _
    $region37: #{tpu_custom_call.1} parent=1 // pred_fallthru
      _
    // Predicated region
    $region38: #{tpu_custom_call.1} parent=1 // pred_check
      _
    $region39: #{tpu_custom_call.1} parent=1 // pred_check_branch
      %58 = sbr.rel (0) target = $region41
    $region40: #{tpu_custom_call.1} parent=1 // pred_region
      _
    $region41: #{tpu_custom_call.1} parent=1 // pred_fallthru
      _
    // Predicated region
    $region42: #{tpu_custom_call.1} parent=1 // pred_check
      _
    $region43: #{tpu_custom_call.1} parent=1 // pred_check_branch
      %60 = sbr.rel (0) target = $region45
    $region44: #{tpu_custom_call.1} parent=1 // pred_region
      %61 = dma.done [#allocation4], 1024
    $region45: #{tpu_custom_call.1} parent=1 // pred_fallthru
      _
    // Predicated region
    $region46: #{tpu_custom_call.1} parent=1 // pred_check
      _
    $region47: #{tpu_custom_call.1} parent=1 // pred_check_branch
      %63 = sbr.rel (0) target = $region49
    $region48: #{tpu_custom_call.1} parent=1 // pred_region
      %64 = dma.done [#allocation7], 1024
    $region49: #{tpu_custom_call.1} parent=1 // pred_fallthru
      _
    %s66 = sld [smem:[#allocation2]]
    %v67 = vld [vmem:[%s1] sm:$0xff]
    %v68 = vld [vmem:[%s1 + $0x8] sm:$0xff]
    %v69 = vld [vmem:[%s1 + $0x10] sm:$0xff]
    %v70 = vld [vmem:[%s1 + $0x18] sm:$0xff]
    %v71 = vld [vmem:[%s1 + $0x20] sm:$0xff]
    %v72 = vld [vmem:[%s1 + $0x28] sm:$0xff]
    %v73 = vld [vmem:[%s1 + $0x30] sm:$0xff]
    %v74 = vld [vmem:[%s1 + $0x38] sm:$0xff]
    %v75 = vld [vmem:[%s1 + $0x40] sm:$0xff]
    %v76 = vld [vmem:[%s1 + $0x48] sm:$0xff]
    %v77 = vld [vmem:[%s1 + $0x50] sm:$0xff]
    %v78 = vld [vmem:[%s1 + $0x58] sm:$0xff]
    %v79 = vld [vmem:[%s1 + $0x60] sm:$0xff]
    %v80 = vld [vmem:[%s1 + $0x68] sm:$0xff]
    %v81 = vld [vmem:[%s1 + $0x70] sm:$0xff]
    %v82 = vld [vmem:[%s1 + $0x78] sm:$0xff]
    %v83 = vpack.c.bf16 %v68, %v67
    %v84 = vpack.c.bf16 %v70, %v69
    %v85 = vpack.c.bf16 %v72, %v71
    %v86 = vpack.c.bf16 %v74, %v73
    %v87 = vpack.c.bf16 %v76, %v75
    %v88 = vpack.c.bf16 %v78, %v77
    %v89 = vpack.c.bf16 %v80, %v79
    %v90 = vpack.c.bf16 %v82, %v81
    %v91 = vld [vmem:[%s3] sm:$0x1]
    %v92 = vld [vmem:[%s5] sm:$0x1]
    %v93 = vld [vmem:[%s7] sm:$0x1]
    %v94 = vld [vmem:[%s9] sm:$0x1]
    %v95 = vld [vmem:[%s2] sm:$0xf]
    %v96 = vld [vmem:[%s2 + $0x4] sm:$0xf]
    %v97 = vld [vmem:[%s2 + $0x8] sm:$0xf]
    %v98 = vld [vmem:[%s2 + $0xc] sm:$0xf]
    %v99 = vlaneseq
    %v100 = vshrl.u32 %v99, 7
    %v101 = vsub.s32 0, %v100
    %v102 = vrot.slane %v91, %v101
    %v107 = vunpack.c.l.b16 %v95
    %v108 = vunpack.c.l.b16 %v96
    %v109 = vunpack.c.l.b16 %v97
    %v110 = vunpack.c.l.b16 %v98
    %v111 = vpack.c.b16 %v108, %v107
    %v112 = vpack.c.b16 %v110, %v109
    %vm115 = vcmask 261120
    %v117 = vsel %vm115, %v83, 0
    %v120 = vsel %vm115, %v84, 0
    %v123 = vsel %vm115, %v85, 0
    %v126 = vsel %vm115, %v86, 0
    %v129 = vsel %vm115, %v87, 0
    %v132 = vsel %vm115, %v88, 0
    %v135 = vsel %vm115, %v89, 0
    %v138 = vsel %vm115, %v90, 0
    %140 = vmatprep.subr.bf16.mxu0 0
    %141 = vmatpush1.bf16.msra.mxu0 0
    %142 = vmatprep.subr.bf16.mxu0 0
    %143 = vmatpush1.bf16.msra.mxu0 0
    %144 = vmatprep.subr.bf16.mxu0 0
    %145 = vmatpush1.bf16.msra.mxu0 0
    %146 = vmatprep.subr.bf16.mxu0 0
    %147 = vmatpush1.bf16.msra.mxu0 0
    %148 = vmatprep.subr.bf16.mxu0 0
    %149 = vmatpush1.bf16.msra.mxu0 0
    %150 = vmatprep.subr.bf16.mxu0 0
    %151 = vmatpush1.bf16.msra.mxu0 0
    %152 = vmatprep.subr.bf16.mxu0 0
    %153 = vmatpush1.bf16.msra.mxu0 %v112
    %154 = vmatprep.subr.bf16.mxu0 0
    %155 = vmatpush1.bf16.msra.mxu0 %v111
    %156 = vmatprep.subr.bf16.mxu0 0
    %157 = vmatpush2.bf16.msra.mxu0 0
    %158 = vmatprep.subr.bf16.mxu0 0
    %159 = vmatpush2.bf16.msra.mxu0 0
    %160 = vmatprep.subr.bf16.mxu0 0
    %161 = vmatpush2.bf16.msra.mxu0 0
    %162 = vmatprep.subr.bf16.mxu0 0
    %163 = vmatpush2.bf16.msra.mxu0 0
    %164 = vmatprep.subr.bf16.mxu0 0
    %165 = vmatpush2.bf16.msra.mxu0 0
    %166 = vmatprep.subr.bf16.mxu0 0
    %167 = vmatpush2.bf16.msra.mxu0 0
    %168 = vmatprep.subr.bf16.mxu0 0
    %169 = vmatpush2.bf16.msra.mxu0 0
    %170 = vmatprep.subr.bf16.mxu0 0
    %171 = vmatpush2.bf16.msra.mxu0 0
    %172 = vmatprep.mubr.bf16.mxu0 0
    %173 = vmatmul.mubr.bf16.gmra.mxu0 %v117
    %v174 = vpop.f32.mrf.mxu0
    %v175 = vadd.f32 %v102, %v174
    %v176 = vpop.f32.mrf.mxu0
    %v177 = vpop.f32.mrf.mxu0
    %v178 = vadd.f32 %v102, %v177
    %v179 = vpop.f32.mrf.mxu0
    %180 = vmatprep.mubr.bf16.mxu0 0
    %181 = vmatmul.mubr.bf16.gmra.mxu0 %v120
    %v182 = vpop.f32.mrf.mxu0
    %v183 = vadd.f32 %v102, %v182
    %v184 = vpop.f32.mrf.mxu0
    %v185 = vpop.f32.mrf.mxu0
    %v186 = vadd.f32 %v102, %v185
    %v187 = vpop.f32.mrf.mxu0
    %188 = vmatprep.mubr.bf16.mxu0 0
    %189 = vmatmul.mubr.bf16.gmra.mxu0 %v123
    %v190 = vpop.f32.mrf.mxu0
    %v191 = vadd.f32 %v102, %v190
    %v192 = vpop.f32.mrf.mxu0
    %v193 = vpop.f32.mrf.mxu0
    %v194 = vadd.f32 %v102, %v193
    %v195 = vpop.f32.mrf.mxu0
    %196 = vmatprep.mubr.bf16.mxu0 0
    %197 = vmatmul.mubr.bf16.gmra.mxu0 %v126
    %v198 = vpop.f32.mrf.mxu0
    %v199 = vadd.f32 %v102, %v198
    %v200 = vpop.f32.mrf.mxu0
    %v201 = vpop.f32.mrf.mxu0
    %v202 = vadd.f32 %v102, %v201
    %v203 = vpop.f32.mrf.mxu0
    %204 = vmatprep.mubr.bf16.mxu0 0
    %205 = vmatmul.mubr.bf16.gmra.mxu0 %v129
    %v206 = vpop.f32.mrf.mxu0
    %v207 = vadd.f32 %v102, %v206
    %v208 = vpop.f32.mrf.mxu0
    %v209 = vpop.f32.mrf.mxu0
    %v210 = vadd.f32 %v102, %v209
    %v211 = vpop.f32.mrf.mxu0
    %212 = vmatprep.mubr.bf16.mxu0 0
    %213 = vmatmul.mubr.bf16.gmra.mxu0 %v132
    %v214 = vpop.f32.mrf.mxu0
    %v215 = vadd.f32 %v102, %v214
    %v216 = vpop.f32.mrf.mxu0
    %v217 = vpop.f32.mrf.mxu0
    %v218 = vadd.f32 %v102, %v217
    %v219 = vpop.f32.mrf.mxu0
    %220 = vmatprep.mubr.bf16.mxu0 0
    %221 = vmatmul.mubr.bf16.gmra.mxu0 %v135
    %v222 = vpop.f32.mrf.mxu0
    %v223 = vadd.f32 %v102, %v222
    %v224 = vpop.f32.mrf.mxu0
    %v225 = vpop.f32.mrf.mxu0
    %v226 = vadd.f32 %v102, %v225
    %v227 = vpop.f32.mrf.mxu0
    %228 = vmatprep.mubr.bf16.mxu0 0
    %229 = vmatmul.mubr.bf16.gmra.mxu0 %v138
    %v230 = vpop.f32.mrf.mxu0
    %v231 = vadd.f32 %v102, %v230
    %v232 = vpop.f32.mrf.mxu0
    %v233 = vpop.f32.mrf.mxu0
    %v234 = vadd.f32 %v102, %v233
    %v235 = vpop.f32.mrf.mxu0
    %236 = vdwg.mxu0
    %vm237 = vcmp.gt.f32.partialorder %v175, 0.0
    %vm238 = vcmp.gt.f32.partialorder %v178, 0.0
    %vm239 = vcmp.gt.f32.partialorder %v183, 0.0
    %vm240 = vcmp.gt.f32.partialorder %v186, 0.0
    %vm241 = vcmp.gt.f32.partialorder %v191, 0.0
    %vm242 = vcmp.gt.f32.partialorder %v194, 0.0
    %vm243 = vcmp.gt.f32.partialorder %v199, 0.0
    %vm244 = vcmp.gt.f32.partialorder %v202, 0.0
    %vm245 = vcmp.gt.f32.partialorder %v207, 0.0
    %vm246 = vcmp.gt.f32.partialorder %v210, 0.0
    %vm247 = vcmp.gt.f32.partialorder %v215, 0.0
    %vm248 = vcmp.gt.f32.partialorder %v218, 0.0
    %vm249 = vcmp.gt.f32.partialorder %v223, 0.0
    %vm250 = vcmp.gt.f32.partialorder %v226, 0.0
    %vm251 = vcmp.gt.f32.partialorder %v231, 0.0
    %vm252 = vcmp.gt.f32.partialorder %v234, 0.0
    %v253 = vstv %s66
    %v254 = vmul.f32 %v253, %v175
    %v255 = vmul.f32 %v253, %v178
    %v256 = vmul.f32 %v253, %v183
    %v257 = vmul.f32 %v253, %v186
    %v258 = vmul.f32 %v253, %v191
    %v259 = vmul.f32 %v253, %v194
    %v260 = vmul.f32 %v253, %v199
    %v261 = vmul.f32 %v253, %v202
    %v262 = vmul.f32 %v253, %v207
    %v263 = vmul.f32 %v253, %v210
    %v264 = vmul.f32 %v253, %v215
    %v265 = vmul.f32 %v253, %v218
    %v266 = vmul.f32 %v253, %v223
    %v267 = vmul.f32 %v253, %v226
    %v268 = vmul.f32 %v253, %v231
    %v269 = vmul.f32 %v253, %v234
    %v270 = vsel %vm237, %v175, %v254
    %v271 = vsel %vm238, %v178, %v255
    %v272 = vsel %vm239, %v183, %v256
    %v273 = vsel %vm240, %v186, %v257
    %v274 = vsel %vm241, %v191, %v258
    %v275 = vsel %vm242, %v194, %v259
    %v276 = vsel %vm243, %v199, %v260
    %v277 = vsel %vm244, %v202, %v261
    %v278 = vsel %vm245, %v207, %v262
    %v279 = vsel %vm246, %v210, %v263
    %v280 = vsel %vm247, %v215, %v264
    %v281 = vsel %vm248, %v218, %v265
    %v282 = vsel %vm249, %v223, %v266
    %v283 = vsel %vm250, %v226, %v267
    %v284 = vsel %vm251, %v231, %v268
    %v285 = vsel %vm252, %v234, %v269
    %v286 = vpack.c.bf16 %v271, %v270
    %v287 = vpack.c.bf16 %v273, %v272
    %v288 = vpack.c.bf16 %v275, %v274
    %v289 = vpack.c.bf16 %v277, %v276
    %v290 = vpack.c.bf16 %v279, %v278
    %v291 = vpack.c.bf16 %v281, %v280
    %v292 = vpack.c.bf16 %v283, %v282
    %v293 = vpack.c.bf16 %v285, %v284
    %v294 = vld [vmem:[#allocation3] sm:$0xf]
    %v295 = vld [vmem:[#allocation3 + $0x4] sm:$0xf]
    %v296 = vld [vmem:[#allocation3 + $0x8] sm:$0xf]
    %v297 = vld [vmem:[#allocation3 + $0xc] sm:$0xf]
    %v298 = vld [vmem:[#allocation3 + $0x10] sm:$0xf]
    %v299 = vld [vmem:[#allocation3 + $0x14] sm:$0xf]
    %v300 = vld [vmem:[#allocation3 + $0x18] sm:$0xf]
    %v301 = vld [vmem:[#allocation3 + $0x1c] sm:$0xf]
    %v302 = vld [vmem:[#allocation3 + $0x20] sm:$0xf]
    %v303 = vld [vmem:[#allocation3 + $0x24] sm:$0xf]
    %v304 = vld [vmem:[#allocation3 + $0x28] sm:$0xf]
    %v305 = vld [vmem:[#allocation3 + $0x2c] sm:$0xf]
    %v306 = vld [vmem:[#allocation3 + $0x30] sm:$0xf]
    %v307 = vld [vmem:[#allocation3 + $0x34] sm:$0xf]
    %v308 = vld [vmem:[#allocation3 + $0x38] sm:$0xf]
    %v309 = vld [vmem:[#allocation3 + $0x3c] sm:$0xf]
    %v310 = vlaneseq
    %v311 = vshrl.u32 %v310, 7
    %v312 = vsub.s32 0, %v311
    %v313 = vrot.slane %v92, %v312
    %v330 = vunpack.c.l.b16 %v294
    %v331 = vunpack.c.l.b16 %v295
    %v332 = vunpack.c.l.b16 %v296
    %v333 = vunpack.c.l.b16 %v297
    %v334 = vunpack.c.l.b16 %v298
    %v335 = vunpack.c.l.b16 %v299
    %v336 = vunpack.c.l.b16 %v300
    %v337 = vunpack.c.l.b16 %v301
    %v338 = vunpack.c.l.b16 %v302
    %v339 = vunpack.c.l.b16 %v303
    %v340 = vunpack.c.l.b16 %v304
    %v341 = vunpack.c.l.b16 %v305
    %v342 = vunpack.c.l.b16 %v306
    %v343 = vunpack.c.l.b16 %v307
    %v344 = vunpack.c.l.b16 %v308
    %v345 = vunpack.c.l.b16 %v309
    %v346 = vpack.c.b16 %v331, %v330
    %v347 = vpack.c.b16 %v333, %v332
    %v348 = vpack.c.b16 %v335, %v334
    %v349 = vpack.c.b16 %v337, %v336
    %v350 = vpack.c.b16 %v339, %v338
    %v351 = vpack.c.b16 %v341, %v340
    %v352 = vpack.c.b16 %v343, %v342
    %v353 = vpack.c.b16 %v345, %v344
    %362 = vmatprep.subr.bf16.mxu0 0
    %363 = vmatpush1.bf16.msra.mxu0 %v353
    %364 = vmatprep.subr.bf16.mxu0 0
    %365 = vmatpush1.bf16.msra.mxu0 %v352
    %366 = vmatprep.subr.bf16.mxu0 0
    %367 = vmatpush1.bf16.msra.mxu0 %v351
    %368 = vmatprep.subr.bf16.mxu0 0
    %369 = vmatpush1.bf16.msra.mxu0 %v350
    %370 = vmatprep.subr.bf16.mxu0 0
    %371 = vmatpush1.bf16.msra.mxu0 %v349
    %372 = vmatprep.subr.bf16.mxu0 0
    %373 = vmatpush1.bf16.msra.mxu0 %v348
    %374 = vmatprep.subr.bf16.mxu0 0
    %375 = vmatpush1.bf16.msra.mxu0 %v347
    %376 = vmatprep.subr.bf16.mxu0 0
    %377 = vmatpush1.bf16.msra.mxu0 %v346
    %378 = vmatprep.subr.bf16.mxu0 0
    %379 = vmatpush2.bf16.msra.mxu0 0
    %380 = vmatprep.subr.bf16.mxu0 0
    %381 = vmatpush2.bf16.msra.mxu0 0
    %382 = vmatprep.subr.bf16.mxu0 0
    %383 = vmatpush2.bf16.msra.mxu0 0
    %384 = vmatprep.subr.bf16.mxu0 0
    %385 = vmatpush2.bf16.msra.mxu0 0
    %386 = vmatprep.subr.bf16.mxu0 0
    %387 = vmatpush2.bf16.msra.mxu0 0
    %388 = vmatprep.subr.bf16.mxu0 0
    %389 = vmatpush2.bf16.msra.mxu0 0
    %390 = vmatprep.subr.bf16.mxu0 0
    %391 = vmatpush2.bf16.msra.mxu0 0
    %392 = vmatprep.subr.bf16.mxu0 0
    %393 = vmatpush2.bf16.msra.mxu0 0
    %394 = vmatprep.mubr.bf16.mxu0 0
    %395 = vmatmul.mubr.bf16.gmra.mxu0 %v286
    %v396 = vpop.f32.mrf.mxu0
    %v397 = vadd.f32 %v313, %v396
    %v398 = vpop.f32.mrf.mxu0
    %v399 = vpop.f32.mrf.mxu0
    %v400 = vadd.f32 %v313, %v399
    %v401 = vpop.f32.mrf.mxu0
    %402 = vmatprep.mubr.bf16.mxu0 0
    %403 = vmatmul.mubr.bf16.gmra.mxu0 %v287
    %v404 = vpop.f32.mrf.mxu0
    %v405 = vadd.f32 %v313, %v404
    %v406 = vpop.f32.mrf.mxu0
    %v407 = vpop.f32.mrf.mxu0
    %v408 = vadd.f32 %v313, %v407
    %v409 = vpop.f32.mrf.mxu0
    %410 = vmatprep.mubr.bf16.mxu0 0
    %411 = vmatmul.mubr.bf16.gmra.mxu0 %v288
    %v412 = vpop.f32.mrf.mxu0
    %v413 = vadd.f32 %v313, %v412
    %v414 = vpop.f32.mrf.mxu0
    %v415 = vpop.f32.mrf.mxu0
    %v416 = vadd.f32 %v313, %v415
    %v417 = vpop.f32.mrf.mxu0
    %418 = vmatprep.mubr.bf16.mxu0 0
    %419 = vmatmul.mubr.bf16.gmra.mxu0 %v289
    %v420 = vpop.f32.mrf.mxu0
    %v421 = vadd.f32 %v313, %v420
    %v422 = vpop.f32.mrf.mxu0
    %v423 = vpop.f32.mrf.mxu0
    %v424 = vadd.f32 %v313, %v423
    %v425 = vpop.f32.mrf.mxu0
    %426 = vmatprep.mubr.bf16.mxu0 0
    %427 = vmatmul.mubr.bf16.gmra.mxu0 %v290
    %v428 = vpop.f32.mrf.mxu0
    %v429 = vadd.f32 %v313, %v428
    %v430 = vpop.f32.mrf.mxu0
    %v431 = vpop.f32.mrf.mxu0
    %v432 = vadd.f32 %v313, %v431
    %v433 = vpop.f32.mrf.mxu0
    %434 = vmatprep.mubr.bf16.mxu0 0
    %435 = vmatmul.mubr.bf16.gmra.mxu0 %v291
    %v436 = vpop.f32.mrf.mxu0
    %v437 = vadd.f32 %v313, %v436
    %v438 = vpop.f32.mrf.mxu0
    %v439 = vpop.f32.mrf.mxu0
    %v440 = vadd.f32 %v313, %v439
    %v441 = vpop.f32.mrf.mxu0
    %442 = vmatprep.mubr.bf16.mxu0 0
    %443 = vmatmul.mubr.bf16.gmra.mxu0 %v292
    %v444 = vpop.f32.mrf.mxu0
    %v445 = vadd.f32 %v313, %v444
    %v446 = vpop.f32.mrf.mxu0
    %v447 = vpop.f32.mrf.mxu0
    %v448 = vadd.f32 %v313, %v447
    %v449 = vpop.f32.mrf.mxu0
    %450 = vmatprep.mubr.bf16.mxu0 0
    %451 = vmatmul.mubr.bf16.gmra.mxu0 %v293
    %v452 = vpop.f32.mrf.mxu0
    %v453 = vadd.f32 %v313, %v452
    %v454 = vpop.f32.mrf.mxu0
    %v455 = vpop.f32.mrf.mxu0
    %v456 = vadd.f32 %v313, %v455
    %v457 = vpop.f32.mrf.mxu0
    %458 = vdwg.mxu0
    %vm459 = vcmp.gt.f32.partialorder %v397, 0.0
    %vm460 = vcmp.gt.f32.partialorder %v400, 0.0
    %vm461 = vcmp.gt.f32.partialorder %v405, 0.0
    %vm462 = vcmp.gt.f32.partialorder %v408, 0.0
    %vm463 = vcmp.gt.f32.partialorder %v413, 0.0
    %vm464 = vcmp.gt.f32.partialorder %v416, 0.0
    %vm465 = vcmp.gt.f32.partialorder %v421, 0.0
    %vm466 = vcmp.gt.f32.partialorder %v424, 0.0
    %vm467 = vcmp.gt.f32.partialorder %v429, 0.0
    %vm468 = vcmp.gt.f32.partialorder %v432, 0.0
    %vm469 = vcmp.gt.f32.partialorder %v437, 0.0
    %vm470 = vcmp.gt.f32.partialorder %v440, 0.0
    %vm471 = vcmp.gt.f32.partialorder %v445, 0.0
    %vm472 = vcmp.gt.f32.partialorder %v448, 0.0
    %vm473 = vcmp.gt.f32.partialorder %v453, 0.0
    %vm474 = vcmp.gt.f32.partialorder %v456, 0.0
    %v475 = vmul.f32 %v253, %v397
    %v476 = vmul.f32 %v253, %v400
    %v477 = vmul.f32 %v253, %v405
    %v478 = vmul.f32 %v253, %v408
    %v479 = vmul.f32 %v253, %v413
    %v480 = vmul.f32 %v253, %v416
    %v481 = vmul.f32 %v253, %v421
    %v482 = vmul.f32 %v253, %v424
    %v483 = vmul.f32 %v253, %v429
    %v484 = vmul.f32 %v253, %v432
    %v485 = vmul.f32 %v253, %v437
    %v486 = vmul.f32 %v253, %v440
    %v487 = vmul.f32 %v253, %v445
    %v488 = vmul.f32 %v253, %v448
    %v489 = vmul.f32 %v253, %v453
    %v490 = vmul.f32 %v253, %v456
    %v491 = vsel %vm459, %v397, %v475
    %v492 = vsel %vm460, %v400, %v476
    %v493 = vsel %vm461, %v405, %v477
    %v494 = vsel %vm462, %v408, %v478
    %v495 = vsel %vm463, %v413, %v479
    %v496 = vsel %vm464, %v416, %v480
    %v497 = vsel %vm465, %v421, %v481
    %v498 = vsel %vm466, %v424, %v482
    %v499 = vsel %vm467, %v429, %v483
    %v500 = vsel %vm468, %v432, %v484
    %v501 = vsel %vm469, %v437, %v485
    %v502 = vsel %vm470, %v440, %v486
    %v503 = vsel %vm471, %v445, %v487
    %v504 = vsel %vm472, %v448, %v488
    %v505 = vsel %vm473, %v453, %v489
    %v506 = vsel %vm474, %v456, %v490
    %v507 = vpack.c.bf16 %v492, %v491
    %v508 = vpack.c.bf16 %v494, %v493
    %v509 = vpack.c.bf16 %v496, %v495
    %v510 = vpack.c.bf16 %v498, %v497
    %v511 = vpack.c.bf16 %v500, %v499
    %v512 = vpack.c.bf16 %v502, %v501
    %v513 = vpack.c.bf16 %v504, %v503
    %v514 = vpack.c.bf16 %v506, %v505
    %v515 = vld [vmem:[#allocation6] sm:$0xf]
    %v516 = vld [vmem:[#allocation6 + $0x4] sm:$0xf]
    %v517 = vld [vmem:[#allocation6 + $0x8] sm:$0xf]
    %v518 = vld [vmem:[#allocation6 + $0xc] sm:$0xf]
    %v519 = vld [vmem:[#allocation6 + $0x10] sm:$0xf]
    %v520 = vld [vmem:[#allocation6 + $0x14] sm:$0xf]
    %v521 = vld [vmem:[#allocation6 + $0x18] sm:$0xf]
    %v522 = vld [vmem:[#allocation6 + $0x1c] sm:$0xf]
    %v523 = vld [vmem:[#allocation6 + $0x20] sm:$0xf]
    %v524 = vld [vmem:[#allocation6 + $0x24] sm:$0xf]
    %v525 = vld [vmem:[#allocation6 + $0x28] sm:$0xf]
    %v526 = vld [vmem:[#allocation6 + $0x2c] sm:$0xf]
    %v527 = vld [vmem:[#allocation6 + $0x30] sm:$0xf]
    %v528 = vld [vmem:[#allocation6 + $0x34] sm:$0xf]
    %v529 = vld [vmem:[#allocation6 + $0x38] sm:$0xf]
    %v530 = vld [vmem:[#allocation6 + $0x3c] sm:$0xf]
    %v531 = vlaneseq
    %v532 = vshrl.u32 %v531, 7
    %v533 = vsub.s32 0, %v532
    %v534 = vrot.slane %v93, %v533
    %v551 = vunpack.c.l.b16 %v515
    %v552 = vunpack.c.l.b16 %v516
    %v553 = vunpack.c.l.b16 %v517
    %v554 = vunpack.c.l.b16 %v518
    %v555 = vunpack.c.l.b16 %v519
    %v556 = vunpack.c.l.b16 %v520
    %v557 = vunpack.c.l.b16 %v521
    %v558 = vunpack.c.l.b16 %v522
    %v559 = vunpack.c.l.b16 %v523
    %v560 = vunpack.c.l.b16 %v524
    %v561 = vunpack.c.l.b16 %v525
    %v562 = vunpack.c.l.b16 %v526
    %v563 = vunpack.c.l.b16 %v527
    %v564 = vunpack.c.l.b16 %v528
    %v565 = vunpack.c.l.b16 %v529
    %v566 = vunpack.c.l.b16 %v530
    %v567 = vpack.c.b16 %v552, %v551
    %v568 = vpack.c.b16 %v554, %v553
    %v569 = vpack.c.b16 %v556, %v555
    %v570 = vpack.c.b16 %v558, %v557
    %v571 = vpack.c.b16 %v560, %v559
    %v572 = vpack.c.b16 %v562, %v561
    %v573 = vpack.c.b16 %v564, %v563
    %v574 = vpack.c.b16 %v566, %v565
    %583 = vmatprep.subr.bf16.mxu0 0
    %584 = vmatpush1.bf16.msra.mxu0 %v574
    %585 = vmatprep.subr.bf16.mxu0 0
    %586 = vmatpush1.bf16.msra.mxu0 %v573
    %587 = vmatprep.subr.bf16.mxu0 0
    %588 = vmatpush1.bf16.msra.mxu0 %v572
    %589 = vmatprep.subr.bf16.mxu0 0
    %590 = vmatpush1.bf16.msra.mxu0 %v571
    %591 = vmatprep.subr.bf16.mxu0 0
    %592 = vmatpush1.bf16.msra.mxu0 %v570
    %593 = vmatprep.subr.bf16.mxu0 0
    %594 = vmatpush1.bf16.msra.mxu0 %v569
    %595 = vmatprep.subr.bf16.mxu0 0
    %596 = vmatpush1.bf16.msra.mxu0 %v568
    %597 = vmatprep.subr.bf16.mxu0 0
    %598 = vmatpush1.bf16.msra.mxu0 %v567
    %599 = vmatprep.subr.bf16.mxu0 0
    %600 = vmatpush2.bf16.msra.mxu0 0
    %601 = vmatprep.subr.bf16.mxu0 0
    %602 = vmatpush2.bf16.msra.mxu0 0
    %603 = vmatprep.subr.bf16.mxu0 0
    %604 = vmatpush2.bf16.msra.mxu0 0
    %605 = vmatprep.subr.bf16.mxu0 0
    %606 = vmatpush2.bf16.msra.mxu0 0
    %607 = vmatprep.subr.bf16.mxu0 0
    %608 = vmatpush2.bf16.msra.mxu0 0
    %609 = vmatprep.subr.bf16.mxu0 0
    %610 = vmatpush2.bf16.msra.mxu0 0
    %611 = vmatprep.subr.bf16.mxu0 0
    %612 = vmatpush2.bf16.msra.mxu0 0
    %613 = vmatprep.subr.bf16.mxu0 0
    %614 = vmatpush2.bf16.msra.mxu0 0
    %615 = vmatprep.mubr.bf16.mxu0 0
    %616 = vmatmul.mubr.bf16.gmra.mxu0 %v507
    %v617 = vpop.f32.mrf.mxu0
    %v618 = vadd.f32 %v534, %v617
    %v619 = vpop.f32.mrf.mxu0
    %v620 = vpop.f32.mrf.mxu0
    %v621 = vadd.f32 %v534, %v620
    %v622 = vpop.f32.mrf.mxu0
    %623 = vmatprep.mubr.bf16.mxu0 0
    %624 = vmatmul.mubr.bf16.gmra.mxu0 %v508
    %v625 = vpop.f32.mrf.mxu0
    %v626 = vadd.f32 %v534, %v625
    %v627 = vpop.f32.mrf.mxu0
    %v628 = vpop.f32.mrf.mxu0
    %v629 = vadd.f32 %v534, %v628
    %v630 = vpop.f32.mrf.mxu0
    %631 = vmatprep.mubr.bf16.mxu0 0
    %632 = vmatmul.mubr.bf16.gmra.mxu0 %v509
    %v633 = vpop.f32.mrf.mxu0
    %v634 = vadd.f32 %v534, %v633
    %v635 = vpop.f32.mrf.mxu0
    %v636 = vpop.f32.mrf.mxu0
    %v637 = vadd.f32 %v534, %v636
    %v638 = vpop.f32.mrf.mxu0
    %639 = vmatprep.mubr.bf16.mxu0 0
    %640 = vmatmul.mubr.bf16.gmra.mxu0 %v510
    %v641 = vpop.f32.mrf.mxu0
    %v642 = vadd.f32 %v534, %v641
    %v643 = vpop.f32.mrf.mxu0
    %v644 = vpop.f32.mrf.mxu0
    %v645 = vadd.f32 %v534, %v644
    %v646 = vpop.f32.mrf.mxu0
    %647 = vmatprep.mubr.bf16.mxu0 0
    %648 = vmatmul.mubr.bf16.gmra.mxu0 %v511
    %v649 = vpop.f32.mrf.mxu0
    %v650 = vadd.f32 %v534, %v649
    %v651 = vpop.f32.mrf.mxu0
    %v652 = vpop.f32.mrf.mxu0
    %v653 = vadd.f32 %v534, %v652
    %v654 = vpop.f32.mrf.mxu0
    %655 = vmatprep.mubr.bf16.mxu0 0
    %656 = vmatmul.mubr.bf16.gmra.mxu0 %v512
    %v657 = vpop.f32.mrf.mxu0
    %v658 = vadd.f32 %v534, %v657
    %v659 = vpop.f32.mrf.mxu0
    %v660 = vpop.f32.mrf.mxu0
    %v661 = vadd.f32 %v534, %v660
    %v662 = vpop.f32.mrf.mxu0
    %663 = vmatprep.mubr.bf16.mxu0 0
    %664 = vmatmul.mubr.bf16.gmra.mxu0 %v513
    %v665 = vpop.f32.mrf.mxu0
    %v666 = vadd.f32 %v534, %v665
    %v667 = vpop.f32.mrf.mxu0
    %v668 = vpop.f32.mrf.mxu0
    %v669 = vadd.f32 %v534, %v668
    %v670 = vpop.f32.mrf.mxu0
    %671 = vmatprep.mubr.bf16.mxu0 0
    %672 = vmatmul.mubr.bf16.gmra.mxu0 %v514
    %v673 = vpop.f32.mrf.mxu0
    %v674 = vadd.f32 %v534, %v673
    %v675 = vpop.f32.mrf.mxu0
    %v676 = vpop.f32.mrf.mxu0
    %v677 = vadd.f32 %v534, %v676
    %v678 = vpop.f32.mrf.mxu0
    %679 = vdwg.mxu0
    %vm680 = vcmp.gt.f32.partialorder %v618, 0.0
    %vm681 = vcmp.gt.f32.partialorder %v621, 0.0
    %vm682 = vcmp.gt.f32.partialorder %v626, 0.0
    %vm683 = vcmp.gt.f32.partialorder %v629, 0.0
    %vm684 = vcmp.gt.f32.partialorder %v634, 0.0
    %vm685 = vcmp.gt.f32.partialorder %v637, 0.0
    %vm686 = vcmp.gt.f32.partialorder %v642, 0.0
    %vm687 = vcmp.gt.f32.partialorder %v645, 0.0
    %vm688 = vcmp.gt.f32.partialorder %v650, 0.0
    %vm689 = vcmp.gt.f32.partialorder %v653, 0.0
    %vm690 = vcmp.gt.f32.partialorder %v658, 0.0
    %vm691 = vcmp.gt.f32.partialorder %v661, 0.0
    %vm692 = vcmp.gt.f32.partialorder %v666, 0.0
    %vm693 = vcmp.gt.f32.partialorder %v669, 0.0
    %vm694 = vcmp.gt.f32.partialorder %v674, 0.0
    %vm695 = vcmp.gt.f32.partialorder %v677, 0.0
    %v696 = vmul.f32 %v253, %v618
    %v697 = vmul.f32 %v253, %v621
    %v698 = vmul.f32 %v253, %v626
    %v699 = vmul.f32 %v253, %v629
    %v700 = vmul.f32 %v253, %v634
    %v701 = vmul.f32 %v253, %v637
    %v702 = vmul.f32 %v253, %v642
    %v703 = vmul.f32 %v253, %v645
    %v704 = vmul.f32 %v253, %v650
    %v705 = vmul.f32 %v253, %v653
    %v706 = vmul.f32 %v253, %v658
    %v707 = vmul.f32 %v253, %v661
    %v708 = vmul.f32 %v253, %v666
    %v709 = vmul.f32 %v253, %v669
    %v710 = vmul.f32 %v253, %v674
    %v711 = vmul.f32 %v253, %v677
    %v712 = vsel %vm680, %v618, %v696
    %v713 = vsel %vm681, %v621, %v697
    %v714 = vsel %vm682, %v626, %v698
    %v715 = vsel %vm683, %v629, %v699
    %v716 = vsel %vm684, %v634, %v700
    %v717 = vsel %vm685, %v637, %v701
    %v718 = vsel %vm686, %v642, %v702
    %v719 = vsel %vm687, %v645, %v703
    %v720 = vsel %vm688, %v650, %v704
    %v721 = vsel %vm689, %v653, %v705
    %v722 = vsel %vm690, %v658, %v706
    %v723 = vsel %vm691, %v661, %v707
    %v724 = vsel %vm692, %v666, %v708
    %v725 = vsel %vm693, %v669, %v709
    %v726 = vsel %vm694, %v674, %v710
    %v727 = vsel %vm695, %v677, %v711
    %v728 = vld [vmem:[%s8] sm:$0xff]
    %v729 = vld [vmem:[%s8 + $0x8] sm:$0xff]
    %v730 = vld [vmem:[%s8 + $0x10] sm:$0xff]
    %v731 = vld [vmem:[%s8 + $0x18] sm:$0xff]
    %v732 = vld [vmem:[%s8 + $0x20] sm:$0xff]
    %v733 = vld [vmem:[%s8 + $0x28] sm:$0xff]
    %v734 = vld [vmem:[%s8 + $0x30] sm:$0xff]
    %v735 = vld [vmem:[%s8 + $0x38] sm:$0xff]
    %v736 = vld [vmem:[%s8 + $0x40] sm:$0xff]
    %v737 = vld [vmem:[%s8 + $0x48] sm:$0xff]
    %v738 = vld [vmem:[%s8 + $0x50] sm:$0xff]
    %v739 = vld [vmem:[%s8 + $0x58] sm:$0xff]
    %v740 = vld [vmem:[%s8 + $0x60] sm:$0xff]
    %v741 = vld [vmem:[%s8 + $0x68] sm:$0xff]
    %v742 = vld [vmem:[%s8 + $0x70] sm:$0xff]
    %v743 = vld [vmem:[%s8 + $0x78] sm:$0xff]
    %v744 = vlaneseq
    %v745 = vshrl.u32 %v744, 7
    %v746 = vsub.s32 0, %v745
    %v747 = vrot.slane %v94, %v746
    %748 = vmatprep.subr.mxu0 0.0
    %749 = vmatpush1.msra.mxu0 %v743
    %750 = vmatprep.subr.mxu0 0.0
    %751 = vmatpush1.msra.mxu0 %v742
    %752 = vmatprep.subr.mxu0 0.0
    %753 = vmatpush1.msra.mxu0 %v741
    %754 = vmatprep.subr.mxu0 0.0
    %755 = vmatpush1.msra.mxu0 %v740
    %756 = vmatprep.subr.mxu0 0.0
    %757 = vmatpush1.msra.mxu0 %v739
    %758 = vmatprep.subr.mxu0 0.0
    %759 = vmatpush1.msra.mxu0 %v738
    %760 = vmatprep.subr.mxu0 0.0
    %761 = vmatpush1.msra.mxu0 %v737
    %762 = vmatprep.subr.mxu0 0.0
    %763 = vmatpush1.msra.mxu0 %v736
    %764 = vmatprep.subr.mxu0 0.0
    %765 = vmatpush1.msra.mxu0 %v735
    %766 = vmatprep.subr.mxu0 0.0
    %767 = vmatpush1.msra.mxu0 %v734
    %768 = vmatprep.subr.mxu0 0.0
    %769 = vmatpush1.msra.mxu0 %v733
    %770 = vmatprep.subr.mxu0 0.0
    %771 = vmatpush1.msra.mxu0 %v732
    %772 = vmatprep.subr.mxu0 0.0
    %773 = vmatpush1.msra.mxu0 %v731
    %774 = vmatprep.subr.mxu0 0.0
    %775 = vmatpush1.msra.mxu0 %v730
    %776 = vmatprep.subr.mxu0 0.0
    %777 = vmatpush1.msra.mxu0 %v729
    %778 = vmatprep.subr.mxu0 0.0
    %779 = vmatpush1.msra.mxu0 %v728
    %780 = vmatprep.subr.mxu0 0.0
    %781 = vmatpush2.msra.mxu0 0.0
    %782 = vmatprep.subr.mxu0 0.0
    %783 = vmatpush2.msra.mxu0 0.0
    %784 = vmatprep.subr.mxu0 0.0
    %785 = vmatpush2.msra.mxu0 0.0
    %786 = vmatprep.subr.mxu0 0.0
    %787 = vmatpush2.msra.mxu0 0.0
    %788 = vmatprep.subr.mxu0 0.0
    %789 = vmatpush2.msra.mxu0 0.0
    %790 = vmatprep.subr.mxu0 0.0
    %791 = vmatpush2.msra.mxu0 0.0
    %792 = vmatprep.subr.mxu0 0.0
    %793 = vmatpush2.msra.mxu0 0.0
    %794 = vmatprep.subr.mxu0 0.0
    %795 = vmatpush2.msra.mxu0 0.0
    %796 = vmatprep.subr.mxu0 0.0
    %797 = vmatpush2.msra.mxu0 0.0
    %798 = vmatprep.subr.mxu0 0.0
    %799 = vmatpush2.msra.mxu0 0.0
    %800 = vmatprep.subr.mxu0 0.0
    %801 = vmatpush2.msra.mxu0 0.0
    %802 = vmatprep.subr.mxu0 0.0
    %803 = vmatpush2.msra.mxu0 0.0
    %804 = vmatprep.subr.mxu0 0.0
    %805 = vmatpush2.msra.mxu0 0.0
    %806 = vmatprep.subr.mxu0 0.0
    %807 = vmatpush2.msra.mxu0 0.0
    %808 = vmatprep.subr.mxu0 0.0
    %809 = vmatpush2.msra.mxu0 0.0
    %810 = vmatprep.subr.mxu0 0.0
    %811 = vmatpush2.msra.mxu0 0.0
    %812 = vmatprep.mubr.f32.mxu0 0.0
    %813 = vmatmul.mubr.f32.gmra.mxu0 %v712
    %v814 = vpop.f32.mrf.mxu0
    %v815 = vadd.f32 %v747, %v814
    %v816 = vpop.f32.mrf.mxu0
    %817 = vmatprep.mubr.f32.mxu0 0.0
    %818 = vmatmul.mubr.f32.gmra.mxu0 %v713
    %v819 = vpop.f32.mrf.mxu0
    %v820 = vadd.f32 %v747, %v819
    %v821 = vpop.f32.mrf.mxu0
    %822 = vmatprep.mubr.f32.mxu0 0.0
    %823 = vmatmul.mubr.f32.gmra.mxu0 %v714
    %v824 = vpop.f32.mrf.mxu0
    %v825 = vadd.f32 %v747, %v824
    %v826 = vpop.f32.mrf.mxu0
    %827 = vmatprep.mubr.f32.mxu0 0.0
    %828 = vmatmul.mubr.f32.gmra.mxu0 %v715
    %v829 = vpop.f32.mrf.mxu0
    %v830 = vadd.f32 %v747, %v829
    %v831 = vpop.f32.mrf.mxu0
    %832 = vmatprep.mubr.f32.mxu0 0.0
    %833 = vmatmul.mubr.f32.gmra.mxu0 %v716
    %v834 = vpop.f32.mrf.mxu0
    %v835 = vadd.f32 %v747, %v834
    %v836 = vpop.f32.mrf.mxu0
    %837 = vmatprep.mubr.f32.mxu0 0.0
    %838 = vmatmul.mubr.f32.gmra.mxu0 %v717
    %v839 = vpop.f32.mrf.mxu0
    %v840 = vadd.f32 %v747, %v839
    %v841 = vpop.f32.mrf.mxu0
    %842 = vmatprep.mubr.f32.mxu0 0.0
    %843 = vmatmul.mubr.f32.gmra.mxu0 %v718
    %v844 = vpop.f32.mrf.mxu0
    %v845 = vadd.f32 %v747, %v844
    %v846 = vpop.f32.mrf.mxu0
    %847 = vmatprep.mubr.f32.mxu0 0.0
    %848 = vmatmul.mubr.f32.gmra.mxu0 %v719
    %v849 = vpop.f32.mrf.mxu0
    %v850 = vadd.f32 %v747, %v849
    %v851 = vpop.f32.mrf.mxu0
    %852 = vmatprep.mubr.f32.mxu0 0.0
    %853 = vmatmul.mubr.f32.gmra.mxu0 %v720
    %v854 = vpop.f32.mrf.mxu0
    %v855 = vadd.f32 %v747, %v854
    %v856 = vpop.f32.mrf.mxu0
    %857 = vmatprep.mubr.f32.mxu0 0.0
    %858 = vmatmul.mubr.f32.gmra.mxu0 %v721
    %v859 = vpop.f32.mrf.mxu0
    %v860 = vadd.f32 %v747, %v859
    %v861 = vpop.f32.mrf.mxu0
    %862 = vmatprep.mubr.f32.mxu0 0.0
    %863 = vmatmul.mubr.f32.gmra.mxu0 %v722
    %v864 = vpop.f32.mrf.mxu0
    %v865 = vadd.f32 %v747, %v864
    %v866 = vpop.f32.mrf.mxu0
    %867 = vmatprep.mubr.f32.mxu0 0.0
    %868 = vmatmul.mubr.f32.gmra.mxu0 %v723
    %v869 = vpop.f32.mrf.mxu0
    %v870 = vadd.f32 %v747, %v869
    %v871 = vpop.f32.mrf.mxu0
    %872 = vmatprep.mubr.f32.mxu0 0.0
    %873 = vmatmul.mubr.f32.gmra.mxu0 %v724
    %v874 = vpop.f32.mrf.mxu0
    %v875 = vadd.f32 %v747, %v874
    %v876 = vpop.f32.mrf.mxu0
    %877 = vmatprep.mubr.f32.mxu0 0.0
    %878 = vmatmul.mubr.f32.gmra.mxu0 %v725
    %v879 = vpop.f32.mrf.mxu0
    %v880 = vadd.f32 %v747, %v879
    %v881 = vpop.f32.mrf.mxu0
    %882 = vmatprep.mubr.f32.mxu0 0.0
    %883 = vmatmul.mubr.f32.gmra.mxu0 %v726
    %v884 = vpop.f32.mrf.mxu0
    %v885 = vadd.f32 %v747, %v884
    %v886 = vpop.f32.mrf.mxu0
    %887 = vmatprep.mubr.f32.mxu0 0.0
    %888 = vmatmul.mubr.f32.gmra.mxu0 %v727
    %v889 = vpop.f32.mrf.mxu0
    %v890 = vadd.f32 %v747, %v889
    %v891 = vpop.f32.mrf.mxu0
    %892 = vdwg.mxu0
    %893 = vst [vmem:[#allocation8] sm:$0xff] %v815
    %894 = vst [vmem:[#allocation8 + $0x8] sm:$0xff] %v820
    %895 = vst [vmem:[#allocation8 + $0x10] sm:$0xff] %v825
    %896 = vst [vmem:[#allocation8 + $0x18] sm:$0xff] %v830
    %897 = vst [vmem:[#allocation8 + $0x20] sm:$0xff] %v835
    %898 = vst [vmem:[#allocation8 + $0x28] sm:$0xff] %v840
    %899 = vst [vmem:[#allocation8 + $0x30] sm:$0xff] %v845
    %900 = vst [vmem:[#allocation8 + $0x38] sm:$0xff] %v850
    %901 = vst [vmem:[#allocation8 + $0x40] sm:$0xff] %v855
    %902 = vst [vmem:[#allocation8 + $0x48] sm:$0xff] %v860
    %903 = vst [vmem:[#allocation8 + $0x50] sm:$0xff] %v865
    %904 = vst [vmem:[#allocation8 + $0x58] sm:$0xff] %v870
    %905 = vst [vmem:[#allocation8 + $0x60] sm:$0xff] %v875
    %906 = vst [vmem:[#allocation8 + $0x68] sm:$0xff] %v880
    %907 = vst [vmem:[#allocation8 + $0x70] sm:$0xff] %v885
    %908 = vst [vmem:[#allocation8 + $0x78] sm:$0xff] %v890
    // Predicated region
    $region50: #{tpu_custom_call.1} parent=1 // pred_check
      _
    $region51: #{tpu_custom_call.1} parent=1 // pred_check_branch
      %910 = sbr.rel (0) target = $region53
    $region52: #{tpu_custom_call.1} parent=1 // pred_region
      %s912 = ssub.s32 2048, 2048
      %913 = vsyncadd [#allocation5], %s912
      %s914 = sshll.u32 [#allocation8], 4
      %s915 = int_to_ptr.vmem [resolvable:$true] %s914
      %920 = dma.vmem_to_hbm [thread:$0]  %s915, 2048, %s10, [#allocation5], 128, 128, 8
    $region53: #{tpu_custom_call.1} parent=1 // pred_fallthru
      _
    // Predicated region
    $region54: #{tpu_custom_call.1} parent=1 // pred_check
      _
    $region55: #{tpu_custom_call.1} parent=1 // pred_check_branch
      %922 = sbr.rel (0) target = $region57
    $region56: #{tpu_custom_call.1} parent=1 // pred_region
      %923 = dma.done [#allocation5], 2048
    $region57: #{tpu_custom_call.1} parent=1 // pred_fallthru
      _
    %924 = vsyncpa [#allocation4], 1
    %925 = vsyncpa [#allocation7], 1
    %926 = vsyncpa [#allocation5], 1

// kernel: tpu_custom_call.1
$region0: #{tpu_custom_call.1}
  #allocation0 [shape = 'u32[]', space=smem, size = 0x4, offset = 0x4, fixed_abs, tag = 'smem constant byte address 0x4 - core index']
  #allocation1 [shape = 'u32[144,128]{1,0:T(1,128)}', space=vmem, size = 0x12000, scoped, tag = 'internal scratch']
  #allocation2 [shape = 'f32[1]{0:T(128)S(6)}', space=smem, size = 0x200, scoped, tag = 'scoped memory for tpu_custom_call.1']
  %s0 = inlined_call_operand.<no memory space> [shape: f32[1], index: 0, kind: input, shape index: {}]
  %s1 = inlined_call_operand.vmem [shape: f32[128,32], index: 1, kind: input, shape index: {}]
  %s2 = inlined_call_operand.vmem [shape: bf16[32,128], index: 2, kind: input, shape index: {}]
  %s3 = inlined_call_operand.vmem [shape: f32[8,128], index: 3, kind: input, shape index: {}]
  %s4 = inlined_call_operand.hbm [shape: bf16[128,128], index: 4, kind: input, shape index: {}]
  %s5 = inlined_call_operand.vmem [shape: f32[8,128], index: 5, kind: input, shape index: {}]
  %s6 = inlined_call_operand.hbm [shape: bf16[128,128], index: 6, kind: input, shape index: {}]
  %s7 = inlined_call_operand.vmem [shape: f32[8,128], index: 7, kind: input, shape index: {}]
  %s8 = inlined_call_operand.vmem [shape: f32[128,128], index: 8, kind: input, shape index: {}]
  %s9 = inlined_call_operand.vmem [shape: f32[8,128], index: 9, kind: input, shape index: {}]
  %s10 = inlined_call_operand.hbm [shape: f32[128,128], index: 10, kind: output, shape index: {}]
  %s11 = sld [smem:[#allocation0]]
  $region58: #{tpu_custom_call.1} parent=0
    _
  %s13 = ssub.s32 1, %s11
  %s14 = scalar_select 0, %s13, %s11
  %15 = sst [smem:[#allocation2]] %s0
  $region1: #{tpu_custom_call.1} parent=0
    #allocation3 [shape = 'u8[32768]{0}', space=vmem, size = 0x8000, scoped, tag = 'input window, operand 4, single buffered']
    #allocation4 [shape = 's32[1]{0}', space=sflag, size = 0x4, scoped, tag = 'scoped memory for tpu_custom_call.1']
    #allocation5 [shape = 's32[1]{0}', space=sflag, size = 0x4, scoped, tag = 'scoped memory for tpu_custom_call.1']
    #allocation6 [shape = 'u8[32768]{0}', space=vmem, size = 0x8000, scoped, tag = 'input window, operand 6, single buffered']
    #allocation7 [shape = 's32[1]{0}', space=sflag, size = 0x4, scoped, tag = 'scoped memory for tpu_custom_call.1']
    #allocation8 [shape = 'u8[65536]{0}', space=vmem, size = 0x10000, scoped, tag = 'output window, operand 0, single buffered']
    %16 = vsyncpa [#allocation4], 0
    %17 = vsyncpa [#allocation7], 0
    %18 = vsyncpa [#allocation5], 0
    // Predicated region
    $region2: #{tpu_custom_call.1} parent=1 // pred_check
      _
    $region3: #{tpu_custom_call.1} parent=1 // pred_check_branch
      %20 = sbr.rel (0) target = $region5
    $region4: #{tpu_custom_call.1} parent=1 // pred_region
      _
    $region5: #{tpu_custom_call.1} parent=1 // pred_fallthru
      _
    // Predicated region
    $region6: #{tpu_custom_call.1} parent=1 // pred_check
      _
    $region7: #{tpu_custom_call.1} parent=1 // pred_check_branch
      %22 = sbr.rel (0) target = $region9
    $region8: #{tpu_custom_call.1} parent=1 // pred_region
      _
    $region9: #{tpu_custom_call.1} parent=1 // pred_fallthru
      _
    // Predicated region
    $region10: #{tpu_custom_call.1} parent=1 // pred_check
      _
    $region11: #{tpu_custom_call.1} parent=1 // pred_check_branch
      %24 = sbr.rel (0) target = $region13
    $region12: #{tpu_custom_call.1} parent=1 // pred_region
      _
    $region13: #{tpu_custom_call.1} parent=1 // pred_fallthru
      _
    // Predicated region
    $region14: #{tpu_custom_call.1} parent=1 // pred_check
      _
    $region15: #{tpu_custom_call.1} parent=1 // pred_check_branch
      %26 = sbr.rel (0) target = $region17
    $region16: #{tpu_custom_call.1} parent=1 // pred_region
      _
    $region17: #{tpu_custom_call.1} parent=1 // pred_fallthru
      _
    // Predicated region
    $region18: #{tpu_custom_call.1} parent=1 // pred_check
      _
    $region19: #{tpu_custom_call.1} parent=1 // pred_check_branch
      %28 = sbr.rel (0) target = $region21
    $region20: #{tpu_custom_call.1} parent=1 // pred_region
      %s30 = ssub.s32 1024, 1024
      %31 = vsyncadd [#allocation4], %s30
      %s32 = sshll.u32 [#allocation3], 4
      %s33 = int_to_ptr.vmem [resolvable:$true] %s32
      %38 = dma.hbm_to_vmem [thread:$0]  %s4, 1024, %s33, [#allocation4], 64, 64, 4
    $region21: #{tpu_custom_call.1} parent=1 // pred_fallthru
      _
    // Predicated region
    $region22: #{tpu_custom_call.1} parent=1 // pred_check
      _
    $region23: #{tpu_custom_call.1} parent=1 // pred_check_branch
      %40 = sbr.rel (0) target = $region25
    $region24: #{tpu_custom_call.1} parent=1 // pred_region
      _
    $region25: #{tpu_custom_call.1} parent=1 // pred_fallthru
      _
    // Predicated region
    $region26: #{tpu_custom_call.1} parent=1 // pred_check
      _
    $region27: #{tpu_custom_call.1} parent=1 // pred_check_branch
      %42 = sbr.rel (0) target = $region29
    $region28: #{tpu_custom_call.1} parent=1 // pred_region
      %s44 = ssub.s32 1024, 1024
      %45 = vsyncadd [#allocation7], %s44
      %s46 = sshll.u32 [#allocation6], 4
      %s47 = int_to_ptr.vmem [resolvable:$true] %s46
      %52 = dma.hbm_to_vmem [thread:$0]  %s6, 1024, %s47, [#allocation7], 64, 64, 4
    $region29: #{tpu_custom_call.1} parent=1 // pred_fallthru
      _
    // Predicated region
    $region30: #{tpu_custom_call.1} parent=1 // pred_check
      _
    $region31: #{tpu_custom_call.1} parent=1 // pred_check_branch
      %54 = sbr.rel (0) target = $region33
    $region32: #{tpu_custom_call.1} parent=1 // pred_region
      _
    $region33: #{tpu_custom_call.1} parent=1 // pred_fallthru
      _
    // Predicated region
    $region34: #{tpu_custom_call.1} parent=1 // pred_check
      _
    $region35: #{tpu_custom_call.1} parent=1 // pred_check_branch
      %56 = sbr.rel (0) target = $region37
    $region36: #{tpu_custom_call.1} parent=1 // pred_region
      _
    $region37: #{tpu_custom_call.1} parent=1 // pred_fallthru
      _
    // Predicated region
    $region38: #{tpu_custom_call.1} parent=1 // pred_check
      _
    $region39: #{tpu_custom_call.1} parent=1 // pred_check_branch
      %58 = sbr.rel (0) target = $region41
    $region40: #{tpu_custom_call.1} parent=1 // pred_region
      _
    $region41: #{tpu_custom_call.1} parent=1 // pred_fallthru
      _
    // Predicated region
    $region42: #{tpu_custom_call.1} parent=1 // pred_check
      _
    $region43: #{tpu_custom_call.1} parent=1 // pred_check_branch
      %60 = sbr.rel (0) target = $region45
    $region44: #{tpu_custom_call.1} parent=1 // pred_region
      %61 = dma.done [#allocation4], 1024
    $region45: #{tpu_custom_call.1} parent=1 // pred_fallthru
      _
    // Predicated region
    $region46: #{tpu_custom_call.1} parent=1 // pred_check
      _
    $region47: #{tpu_custom_call.1} parent=1 // pred_check_branch
      %63 = sbr.rel (0) target = $region49
    $region48: #{tpu_custom_call.1} parent=1 // pred_region
      %64 = dma.done [#allocation7], 1024
    $region49: #{tpu_custom_call.1} parent=1 // pred_fallthru
      _
    %s66 = sld [smem:[#allocation2]]
    %v67 = vld [vmem:[%s1] sm:$0xff]
    %v68 = vld [vmem:[%s1 + $0x8] sm:$0xff]
    %v69 = vld [vmem:[%s1 + $0x10] sm:$0xff]
    %v70 = vld [vmem:[%s1 + $0x18] sm:$0xff]
    %v71 = vld [vmem:[%s1 + $0x20] sm:$0xff]
    %v72 = vld [vmem:[%s1 + $0x28] sm:$0xff]
    %v73 = vld [vmem:[%s1 + $0x30] sm:$0xff]
    %v74 = vld [vmem:[%s1 + $0x38] sm:$0xff]
    %v75 = vld [vmem:[%s1 + $0x40] sm:$0xff]
    %v76 = vld [vmem:[%s1 + $0x48] sm:$0xff]
    %v77 = vld [vmem:[%s1 + $0x50] sm:$0xff]
    %v78 = vld [vmem:[%s1 + $0x58] sm:$0xff]
    %v79 = vld [vmem:[%s1 + $0x60] sm:$0xff]
    %v80 = vld [vmem:[%s1 + $0x68] sm:$0xff]
    %v81 = vld [vmem:[%s1 + $0x70] sm:$0xff]
    %v82 = vld [vmem:[%s1 + $0x78] sm:$0xff]
    %v83 = vpack.c.bf16 %v68, %v67
    %v84 = vpack.c.bf16 %v70, %v69
    %v85 = vpack.c.bf16 %v72, %v71
    %v86 = vpack.c.bf16 %v74, %v73
    %v87 = vpack.c.bf16 %v76, %v75
    %v88 = vpack.c.bf16 %v78, %v77
    %v89 = vpack.c.bf16 %v80, %v79
    %v90 = vpack.c.bf16 %v82, %v81
    %v91 = vld [vmem:[%s3] sm:$0x1]
    %v92 = vld [vmem:[%s5] sm:$0x1]
    %v93 = vld [vmem:[%s7] sm:$0x1]
    %v94 = vld [vmem:[%s9] sm:$0x1]
    %v95 = vld [vmem:[%s2] sm:$0xf]
    %v96 = vld [vmem:[%s2 + $0x4] sm:$0xf]
    %v97 = vld [vmem:[%s2 + $0x8] sm:$0xf]
    %v98 = vld [vmem:[%s2 + $0xc] sm:$0xf]
    %v99 = vlaneseq
    %v100 = vshrl.u32 %v99, 7
    %v101 = vsub.s32 0, %v100
    %v102 = vrot.slane %v91, %v101
    %v107 = vunpack.c.l.b16 %v95
    %v108 = vunpack.c.l.b16 %v96
    %v109 = vunpack.c.l.b16 %v97
    %v110 = vunpack.c.l.b16 %v98
    %v111 = vpack.c.b16 %v108, %v107
    %v112 = vpack.c.b16 %v110, %v109
    %vm115 = vcmask 261120
    %v117 = vsel %vm115, %v83, 0
    %v120 = vsel %vm115, %v84, 0
    %v123 = vsel %vm115, %v85, 0
    %v126 = vsel %vm115, %v86, 0
    %v129 = vsel %vm115, %v87, 0
    %v132 = vsel %vm115, %v88, 0
    %v135 = vsel %vm115, %v89, 0
    %v138 = vsel %vm115, %v90, 0
    %140 = vmatprep.subr.bf16.mxu0 0
    %141 = vmatpush1.bf16.msra.mxu0 0
    %142 = vmatprep.subr.bf16.mxu0 0
    %143 = vmatpush1.bf16.msra.mxu0 0
    %144 = vmatprep.subr.bf16.mxu0 0
    %145 = vmatpush1.bf16.msra.mxu0 0
    %146 = vmatprep.subr.bf16.mxu0 0
    %147 = vmatpush1.bf16.msra.mxu0 0
    %148 = vmatprep.subr.bf16.mxu0 0
    %149 = vmatpush1.bf16.msra.mxu0 0
    %150 = vmatprep.subr.bf16.mxu0 0
    %151 = vmatpush1.bf16.msra.mxu0 0
    %152 = vmatprep.subr.bf16.mxu0 0
    %153 = vmatpush1.bf16.msra.mxu0 %v112
    %154 = vmatprep.subr.bf16.mxu0 0
    %155 = vmatpush1.bf16.msra.mxu0 %v111
    %156 = vmatprep.subr.bf16.mxu0 0
    %157 = vmatpush2.bf16.msra.mxu0 0
    %158 = vmatprep.subr.bf16.mxu0 0
    %159 = vmatpush2.bf16.msra.mxu0 0
    %160 = vmatprep.subr.bf16.mxu0 0
    %161 = vmatpush2.bf16.msra.mxu0 0
    %162 = vmatprep.subr.bf16.mxu0 0
    %163 = vmatpush2.bf16.msra.mxu0 0
    %164 = vmatprep.subr.bf16.mxu0 0
    %165 = vmatpush2.bf16.msra.mxu0 0
    %166 = vmatprep.subr.bf16.mxu0 0
    %167 = vmatpush2.bf16.msra.mxu0 0
    %168 = vmatprep.subr.bf16.mxu0 0
    %169 = vmatpush2.bf16.msra.mxu0 0
    %170 = vmatprep.subr.bf16.mxu0 0
    %171 = vmatpush2.bf16.msra.mxu0 0
    %172 = vmatprep.mubr.bf16.mxu0 0
    %173 = vmatmul.mubr.bf16.gmra.mxu0 %v117
    %v174 = vpop.f32.mrf.mxu0
    %v175 = vadd.f32 %v102, %v174
    %v176 = vpop.f32.mrf.mxu0
    %v177 = vpop.f32.mrf.mxu0
    %v178 = vadd.f32 %v102, %v177
    %v179 = vpop.f32.mrf.mxu0
    %180 = vmatprep.mubr.bf16.mxu0 0
    %181 = vmatmul.mubr.bf16.gmra.mxu0 %v120
    %v182 = vpop.f32.mrf.mxu0
    %v183 = vadd.f32 %v102, %v182
    %v184 = vpop.f32.mrf.mxu0
    %v185 = vpop.f32.mrf.mxu0
    %v186 = vadd.f32 %v102, %v185
    %v187 = vpop.f32.mrf.mxu0
    %188 = vmatprep.mubr.bf16.mxu0 0
    %189 = vmatmul.mubr.bf16.gmra.mxu0 %v123
    %v190 = vpop.f32.mrf.mxu0
    %v191 = vadd.f32 %v102, %v190
    %v192 = vpop.f32.mrf.mxu0
    %v193 = vpop.f32.mrf.mxu0
    %v194 = vadd.f32 %v102, %v193
    %v195 = vpop.f32.mrf.mxu0
    %196 = vmatprep.mubr.bf16.mxu0 0
    %197 = vmatmul.mubr.bf16.gmra.mxu0 %v126
    %v198 = vpop.f32.mrf.mxu0
    %v199 = vadd.f32 %v102, %v198
    %v200 = vpop.f32.mrf.mxu0
    %v201 = vpop.f32.mrf.mxu0
    %v202 = vadd.f32 %v102, %v201
    %v203 = vpop.f32.mrf.mxu0
    %204 = vmatprep.mubr.bf16.mxu0 0
    %205 = vmatmul.mubr.bf16.gmra.mxu0 %v129
    %v206 = vpop.f32.mrf.mxu0
    %v207 = vadd.f32 %v102, %v206
    %v208 = vpop.f32.mrf.mxu0
    %v209 = vpop.f32.mrf.mxu0
    %v210 = vadd.f32 %v102, %v209
    %v211 = vpop.f32.mrf.mxu0
    %212 = vmatprep.mubr.bf16.mxu0 0
    %213 = vmatmul.mubr.bf16.gmra.mxu0 %v132
    %v214 = vpop.f32.mrf.mxu0
    %v215 = vadd.f32 %v102, %v214
    %v216 = vpop.f32.mrf.mxu0
    %v217 = vpop.f32.mrf.mxu0
    %v218 = vadd.f32 %v102, %v217
    %v219 = vpop.f32.mrf.mxu0
    %220 = vmatprep.mubr.bf16.mxu0 0
    %221 = vmatmul.mubr.bf16.gmra.mxu0 %v135
    %v222 = vpop.f32.mrf.mxu0
    %v223 = vadd.f32 %v102, %v222
    %v224 = vpop.f32.mrf.mxu0
    %v225 = vpop.f32.mrf.mxu0
    %v226 = vadd.f32 %v102, %v225
    %v227 = vpop.f32.mrf.mxu0
    %228 = vmatprep.mubr.bf16.mxu0 0
    %229 = vmatmul.mubr.bf16.gmra.mxu0 %v138
    %v230 = vpop.f32.mrf.mxu0
    %v231 = vadd.f32 %v102, %v230
    %v232 = vpop.f32.mrf.mxu0
    %v233 = vpop.f32.mrf.mxu0
    %v234 = vadd.f32 %v102, %v233
    %v235 = vpop.f32.mrf.mxu0
    %236 = vdwg.mxu0
    %vm237 = vcmp.gt.f32.partialorder %v175, 0.0
    %vm238 = vcmp.gt.f32.partialorder %v178, 0.0
    %vm239 = vcmp.gt.f32.partialorder %v183, 0.0
    %vm240 = vcmp.gt.f32.partialorder %v186, 0.0
    %vm241 = vcmp.gt.f32.partialorder %v191, 0.0
    %vm242 = vcmp.gt.f32.partialorder %v194, 0.0
    %vm243 = vcmp.gt.f32.partialorder %v199, 0.0
    %vm244 = vcmp.gt.f32.partialorder %v202, 0.0
    %vm245 = vcmp.gt.f32.partialorder %v207, 0.0
    %vm246 = vcmp.gt.f32.partialorder %v210, 0.0
    %vm247 = vcmp.gt.f32.partialorder %v215, 0.0
    %vm248 = vcmp.gt.f32.partialorder %v218, 0.0
    %vm249 = vcmp.gt.f32.partialorder %v223, 0.0
    %vm250 = vcmp.gt.f32.partialorder %v226, 0.0
    %vm251 = vcmp.gt.f32.partialorder %v231, 0.0
    %vm252 = vcmp.gt.f32.partialorder %v234, 0.0
    %v253 = vstv %s66
    %v254 = vmul.f32 %v253, %v175
    %v255 = vmul.f32 %v253, %v178
    %v256 = vmul.f32 %v253, %v183
    %v257 = vmul.f32 %v253, %v186
    %v258 = vmul.f32 %v253, %v191
    %v259 = vmul.f32 %v253, %v194
    %v260 = vmul.f32 %v253, %v199
    %v261 = vmul.f32 %v253, %v202
    %v262 = vmul.f32 %v253, %v207
    %v263 = vmul.f32 %v253, %v210
    %v264 = vmul.f32 %v253, %v215
    %v265 = vmul.f32 %v253, %v218
    %v266 = vmul.f32 %v253, %v223
    %v267 = vmul.f32 %v253, %v226
    %v268 = vmul.f32 %v253, %v231
    %v269 = vmul.f32 %v253, %v234
    %v270 = vsel %vm237, %v175, %v254
    %v271 = vsel %vm238, %v178, %v255
    %v272 = vsel %vm239, %v183, %v256
    %v273 = vsel %vm240, %v186, %v257
    %v274 = vsel %vm241, %v191, %v258
    %v275 = vsel %vm242, %v194, %v259
    %v276 = vsel %vm243, %v199, %v260
    %v277 = vsel %vm244, %v202, %v261
    %v278 = vsel %vm245, %v207, %v262
    %v279 = vsel %vm246, %v210, %v263
    %v280 = vsel %vm247, %v215, %v264
    %v281 = vsel %vm248, %v218, %v265
    %v282 = vsel %vm249, %v223, %v266
    %v283 = vsel %vm250, %v226, %v267
    %v284 = vsel %vm251, %v231, %v268
    %v285 = vsel %vm252, %v234, %v269
    %v286 = vpack.c.bf16 %v271, %v270
    %v287 = vpack.c.bf16 %v273, %v272
    %v288 = vpack.c.bf16 %v275, %v274
    %v289 = vpack.c.bf16 %v277, %v276
    %v290 = vpack.c.bf16 %v279, %v278
    %v291 = vpack.c.bf16 %v281, %v280
    %v292 = vpack.c.bf16 %v283, %v282
    %v293 = vpack.c.bf16 %v285, %v284
    %v294 = vld [vmem:[#allocation3] sm:$0xf]
    %v295 = vld [vmem:[#allocation3 + $0x4] sm:$0xf]
    %v296 = vld [vmem:[#allocation3 + $0x8] sm:$0xf]
    %v297 = vld [vmem:[#allocation3 + $0xc] sm:$0xf]
    %v298 = vld [vmem:[#allocation3 + $0x10] sm:$0xf]
    %v299 = vld [vmem:[#allocation3 + $0x14] sm:$0xf]
    %v300 = vld [vmem:[#allocation3 + $0x18] sm:$0xf]
    %v301 = vld [vmem:[#allocation3 + $0x1c] sm:$0xf]
    %v302 = vld [vmem:[#allocation3 + $0x20] sm:$0xf]
    %v303 = vld [vmem:[#allocation3 + $0x24] sm:$0xf]
    %v304 = vld [vmem:[#allocation3 + $0x28] sm:$0xf]
    %v305 = vld [vmem:[#allocation3 + $0x2c] sm:$0xf]
    %v306 = vld [vmem:[#allocation3 + $0x30] sm:$0xf]
    %v307 = vld [vmem:[#allocation3 + $0x34] sm:$0xf]
    %v308 = vld [vmem:[#allocation3 + $0x38] sm:$0xf]
    %v309 = vld [vmem:[#allocation3 + $0x3c] sm:$0xf]
    %v310 = vlaneseq
    %v311 = vshrl.u32 %v310, 7
    %v312 = vsub.s32 0, %v311
    %v313 = vrot.slane %v92, %v312
    %v330 = vunpack.c.l.b16 %v294
    %v331 = vunpack.c.l.b16 %v295
    %v332 = vunpack.c.l.b16 %v296
    %v333 = vunpack.c.l.b16 %v297
    %v334 = vunpack.c.l.b16 %v298
    %v335 = vunpack.c.l.b16 %v299
    %v336 = vunpack.c.l.b16 %v300
    %v337 = vunpack.c.l.b16 %v301
    %v338 = vunpack.c.l.b16 %v302
    %v339 = vunpack.c.l.b16 %v303
    %v340 = vunpack.c.l.b16 %v304
    %v341 = vunpack.c.l.b16 %v305
    %v342 = vunpack.c.l.b16 %v306
    %v343 = vunpack.c.l.b16 %v307
    %v344 = vunpack.c.l.b16 %v308
    %v345 = vunpack.c.l.b16 %v309
    %v346 = vpack.c.b16 %v331, %v330
    %v347 = vpack.c.b16 %v333, %v332
    %v348 = vpack.c.b16 %v335, %v334
    %v349 = vpack.c.b16 %v337, %v336
    %v350 = vpack.c.b16 %v339, %v338
    %v351 = vpack.c.b16 %v341, %v340
    %v352 = vpack.c.b16 %v343, %v342
    %v353 = vpack.c.b16 %v345, %v344
    %362 = vmatprep.subr.bf16.mxu0 0
    %363 = vmatpush1.bf16.msra.mxu0 %v353
    %364 = vmatprep.subr.bf16.mxu0 0
    %365 = vmatpush1.bf16.msra.mxu0 %v352
    %366 = vmatprep.subr.bf16.mxu0 0
    %367 = vmatpush1.bf16.msra.mxu0 %v351
    %368 = vmatprep.subr.bf16.mxu0 0
    %369 = vmatpush1.bf16.msra.mxu0 %v350
    %370 = vmatprep.subr.bf16.mxu0 0
    %371 = vmatpush1.bf16.msra.mxu0 %v349
    %372 = vmatprep.subr.bf16.mxu0 0
    %373 = vmatpush1.bf16.msra.mxu0 %v348
    %374 = vmatprep.subr.bf16.mxu0 0
    %375 = vmatpush1.bf16.msra.mxu0 %v347
    %376 = vmatprep.subr.bf16.mxu0 0
    %377 = vmatpush1.bf16.msra.mxu0 %v346
    %378 = vmatprep.subr.bf16.mxu0 0
    %379 = vmatpush2.bf16.msra.mxu0 0
    %380 = vmatprep.subr.bf16.mxu0 0
    %381 = vmatpush2.bf16.msra.mxu0 0
    %382 = vmatprep.subr.bf16.mxu0 0
    %383 = vmatpush2.bf16.msra.mxu0 0
    %384 = vmatprep.subr.bf16.mxu0 0
    %385 = vmatpush2.bf16.msra.mxu0 0
    %386 = vmatprep.subr.bf16.mxu0 0
    %387 = vmatpush2.bf16.msra.mxu0 0
    %388 = vmatprep.subr.bf16.mxu0 0
    %389 = vmatpush2.bf16.msra.mxu0 0
    %390 = vmatprep.subr.bf16.mxu0 0
    %391 = vmatpush2.bf16.msra.mxu0 0
    %392 = vmatprep.subr.bf16.mxu0 0
    %393 = vmatpush2.bf16.msra.mxu0 0
    %394 = vmatprep.mubr.bf16.mxu0 0
    %395 = vmatmul.mubr.bf16.gmra.mxu0 %v286
    %v396 = vpop.f32.mrf.mxu0
    %v397 = vadd.f32 %v313, %v396
    %v398 = vpop.f32.mrf.mxu0
    %v399 = vpop.f32.mrf.mxu0
    %v400 = vadd.f32 %v313, %v399
    %v401 = vpop.f32.mrf.mxu0
    %402 = vmatprep.mubr.bf16.mxu0 0
    %403 = vmatmul.mubr.bf16.gmra.mxu0 %v287
    %v404 = vpop.f32.mrf.mxu0
    %v405 = vadd.f32 %v313, %v404
    %v406 = vpop.f32.mrf.mxu0
    %v407 = vpop.f32.mrf.mxu0
    %v408 = vadd.f32 %v313, %v407
    %v409 = vpop.f32.mrf.mxu0
    %410 = vmatprep.mubr.bf16.mxu0 0
    %411 = vmatmul.mubr.bf16.gmra.mxu0 %v288
    %v412 = vpop.f32.mrf.mxu0
    %v413 = vadd.f32 %v313, %v412
    %v414 = vpop.f32.mrf.mxu0
    %v415 = vpop.f32.mrf.mxu0
    %v416 = vadd.f32 %v313, %v415
    %v417 = vpop.f32.mrf.mxu0
    %418 = vmatprep.mubr.bf16.mxu0 0
    %419 = vmatmul.mubr.bf16.gmra.mxu0 %v289
    %v420 = vpop.f32.mrf.mxu0
    %v421 = vadd.f32 %v313, %v420
    %v422 = vpop.f32.mrf.mxu0
    %v423 = vpop.f32.mrf.mxu0
    %v424 = vadd.f32 %v313, %v423
    %v425 = vpop.f32.mrf.mxu0
    %426 = vmatprep.mubr.bf16.mxu0 0
    %427 = vmatmul.mubr.bf16.gmra.mxu0 %v290
    %v428 = vpop.f32.mrf.mxu0
    %v429 = vadd.f32 %v313, %v428
    %v430 = vpop.f32.mrf.mxu0
    %v431 = vpop.f32.mrf.mxu0
    %v432 = vadd.f32 %v313, %v431
    %v433 = vpop.f32.mrf.mxu0
    %434 = vmatprep.mubr.bf16.mxu0 0
    %435 = vmatmul.mubr.bf16.gmra.mxu0 %v291
    %v436 = vpop.f32.mrf.mxu0
    %v437 = vadd.f32 %v313, %v436
    %v438 = vpop.f32.mrf.mxu0
    %v439 = vpop.f32.mrf.mxu0
    %v440 = vadd.f32 %v313, %v439
    %v441 = vpop.f32.mrf.mxu0
    %442 = vmatprep.mubr.bf16.mxu0 0
    %443 = vmatmul.mubr.bf16.gmra.mxu0 %v292
    %v444 = vpop.f32.mrf.mxu0
    %v445 = vadd.f32 %v313, %v444
    %v446 = vpop.f32.mrf.mxu0
    %v447 = vpop.f32.mrf.mxu0
    %v448 = vadd.f32 %v313, %v447
    %v449 = vpop.f32.mrf.mxu0
    %450 = vmatprep.mubr.bf16.mxu0 0
    %451 = vmatmul.mubr.bf16.gmra.mxu0 %v293
    %v452 = vpop.f32.mrf.mxu0
    %v453 = vadd.f32 %v313, %v452
    %v454 = vpop.f32.mrf.mxu0
    %v455 = vpop.f32.mrf.mxu0
    %v456 = vadd.f32 %v313, %v455
    %v457 = vpop.f32.mrf.mxu0
    %458 = vdwg.mxu0
    %vm459 = vcmp.gt.f32.partialorder %v397, 0.0
    %vm460 = vcmp.gt.f32.partialorder %v400, 0.0
    %vm461 = vcmp.gt.f32.partialorder %v405, 0.0
    %vm462 = vcmp.gt.f32.partialorder %v408, 0.0
    %vm463 = vcmp.gt.f32.partialorder %v413, 0.0
    %vm464 = vcmp.gt.f32.partialorder %v416, 0.0
    %vm465 = vcmp.gt.f32.partialorder %v421, 0.0
    %vm466 = vcmp.gt.f32.partialorder %v424, 0.0
    %vm467 = vcmp.gt.f32.partialorder %v429, 0.0
    %vm468 = vcmp.gt.f32.partialorder %v432, 0.0
    %vm469 = vcmp.gt.f32.partialorder %v437, 0.0
    %vm470 = vcmp.gt.f32.partialorder %v440, 0.0
    %vm471 = vcmp.gt.f32.partialorder %v445, 0.0
    %vm472 = vcmp.gt.f32.partialorder %v448, 0.0
    %vm473 = vcmp.gt.f32.partialorder %v453, 0.0
    %vm474 = vcmp.gt.f32.partialorder %v456, 0.0
    %v475 = vmul.f32 %v253, %v397
    %v476 = vmul.f32 %v253, %v400
    %v477 = vmul.f32 %v253, %v405
    %v478 = vmul.f32 %v253, %v408
    %v479 = vmul.f32 %v253, %v413
    %v480 = vmul.f32 %v253, %v416
    %v481 = vmul.f32 %v253, %v421
    %v482 = vmul.f32 %v253, %v424
    %v483 = vmul.f32 %v253, %v429
    %v484 = vmul.f32 %v253, %v432
    %v485 = vmul.f32 %v253, %v437
    %v486 = vmul.f32 %v253, %v440
    %v487 = vmul.f32 %v253, %v445
    %v488 = vmul.f32 %v253, %v448
    %v489 = vmul.f32 %v253, %v453
    %v490 = vmul.f32 %v253, %v456
    %v491 = vsel %vm459, %v397, %v475
    %v492 = vsel %vm460, %v400, %v476
    %v493 = vsel %vm461, %v405, %v477
    %v494 = vsel %vm462, %v408, %v478
    %v495 = vsel %vm463, %v413, %v479
    %v496 = vsel %vm464, %v416, %v480
    %v497 = vsel %vm465, %v421, %v481
    %v498 = vsel %vm466, %v424, %v482
    %v499 = vsel %vm467, %v429, %v483
    %v500 = vsel %vm468, %v432, %v484
    %v501 = vsel %vm469, %v437, %v485
    %v502 = vsel %vm470, %v440, %v486
    %v503 = vsel %vm471, %v445, %v487
    %v504 = vsel %vm472, %v448, %v488
    %v505 = vsel %vm473, %v453, %v489
    %v506 = vsel %vm474, %v456, %v490
    %v507 = vpack.c.bf16 %v492, %v491
    %v508 = vpack.c.bf16 %v494, %v493
    %v509 = vpack.c.bf16 %v496, %v495
    %v510 = vpack.c.bf16 %v498, %v497
    %v511 = vpack.c.bf16 %v500, %v499
    %v512 = vpack.c.bf16 %v502, %v501
    %v513 = vpack.c.bf16 %v504, %v503
    %v514 = vpack.c.bf16 %v506, %v505
    %v515 = vld [vmem:[#allocation6] sm:$0xf]
    %v516 = vld [vmem:[#allocation6 + $0x4] sm:$0xf]
    %v517 = vld [vmem:[#allocation6 + $0x8] sm:$0xf]
    %v518 = vld [vmem:[#allocation6 + $0xc] sm:$0xf]
    %v519 = vld [vmem:[#allocation6 + $0x10] sm:$0xf]
    %v520 = vld [vmem:[#allocation6 + $0x14] sm:$0xf]
    %v521 = vld [vmem:[#allocation6 + $0x18] sm:$0xf]
    %v522 = vld [vmem:[#allocation6 + $0x1c] sm:$0xf]
    %v523 = vld [vmem:[#allocation6 + $0x20] sm:$0xf]
    %v524 = vld [vmem:[#allocation6 + $0x24] sm:$0xf]
    %v525 = vld [vmem:[#allocation6 + $0x28] sm:$0xf]
    %v526 = vld [vmem:[#allocation6 + $0x2c] sm:$0xf]
    %v527 = vld [vmem:[#allocation6 + $0x30] sm:$0xf]
    %v528 = vld [vmem:[#allocation6 + $0x34] sm:$0xf]
    %v529 = vld [vmem:[#allocation6 + $0x38] sm:$0xf]
    %v530 = vld [vmem:[#allocation6 + $0x3c] sm:$0xf]
    %v531 = vlaneseq
    %v532 = vshrl.u32 %v531, 7
    %v533 = vsub.s32 0, %v532
    %v534 = vrot.slane %v93, %v533
    %v551 = vunpack.c.l.b16 %v515
    %v552 = vunpack.c.l.b16 %v516
    %v553 = vunpack.c.l.b16 %v517
    %v554 = vunpack.c.l.b16 %v518
    %v555 = vunpack.c.l.b16 %v519
    %v556 = vunpack.c.l.b16 %v520
    %v557 = vunpack.c.l.b16 %v521
    %v558 = vunpack.c.l.b16 %v522
    %v559 = vunpack.c.l.b16 %v523
    %v560 = vunpack.c.l.b16 %v524
    %v561 = vunpack.c.l.b16 %v525
    %v562 = vunpack.c.l.b16 %v526
    %v563 = vunpack.c.l.b16 %v527
    %v564 = vunpack.c.l.b16 %v528
    %v565 = vunpack.c.l.b16 %v529
    %v566 = vunpack.c.l.b16 %v530
    %v567 = vpack.c.b16 %v552, %v551
    %v568 = vpack.c.b16 %v554, %v553
    %v569 = vpack.c.b16 %v556, %v555
    %v570 = vpack.c.b16 %v558, %v557
    %v571 = vpack.c.b16 %v560, %v559
    %v572 = vpack.c.b16 %v562, %v561
    %v573 = vpack.c.b16 %v564, %v563
    %v574 = vpack.c.b16 %v566, %v565
    %583 = vmatprep.subr.bf16.mxu0 0
    %584 = vmatpush1.bf16.msra.mxu0 %v574
    %585 = vmatprep.subr.bf16.mxu0 0
    %586 = vmatpush1.bf16.msra.mxu0 %v573
    %587 = vmatprep.subr.bf16.mxu0 0
    %588 = vmatpush1.bf16.msra.mxu0 %v572
    %589 = vmatprep.subr.bf16.mxu0 0
    %590 = vmatpush1.bf16.msra.mxu0 %v571
    %591 = vmatprep.subr.bf16.mxu0 0
    %592 = vmatpush1.bf16.msra.mxu0 %v570
    %593 = vmatprep.subr.bf16.mxu0 0
    %594 = vmatpush1.bf16.msra.mxu0 %v569
    %595 = vmatprep.subr.bf16.mxu0 0
    %596 = vmatpush1.bf16.msra.mxu0 %v568
    %597 = vmatprep.subr.bf16.mxu0 0
    %598 = vmatpush1.bf16.msra.mxu0 %v567
    %599 = vmatprep.subr.bf16.mxu0 0
    %600 = vmatpush2.bf16.msra.mxu0 0
    %601 = vmatprep.subr.bf16.mxu0 0
    %602 = vmatpush2.bf16.msra.mxu0 0
    %603 = vmatprep.subr.bf16.mxu0 0
    %604 = vmatpush2.bf16.msra.mxu0 0
    %605 = vmatprep.subr.bf16.mxu0 0
    %606 = vmatpush2.bf16.msra.mxu0 0
    %607 = vmatprep.subr.bf16.mxu0 0
    %608 = vmatpush2.bf16.msra.mxu0 0
    %609 = vmatprep.subr.bf16.mxu0 0
    %610 = vmatpush2.bf16.msra.mxu0 0
    %611 = vmatprep.subr.bf16.mxu0 0
    %612 = vmatpush2.bf16.msra.mxu0 0
    %613 = vmatprep.subr.bf16.mxu0 0
    %614 = vmatpush2.bf16.msra.mxu0 0
    %615 = vmatprep.mubr.bf16.mxu0 0
    %616 = vmatmul.mubr.bf16.gmra.mxu0 %v507
    %v617 = vpop.f32.mrf.mxu0
    %v618 = vadd.f32 %v534, %v617
    %v619 = vpop.f32.mrf.mxu0
    %v620 = vpop.f32.mrf.mxu0
    %v621 = vadd.f32 %v534, %v620
    %v622 = vpop.f32.mrf.mxu0
    %623 = vmatprep.mubr.bf16.mxu0 0
    %624 = vmatmul.mubr.bf16.gmra.mxu0 %v508
    %v625 = vpop.f32.mrf.mxu0
    %v626 = vadd.f32 %v534, %v625
    %v627 = vpop.f32.mrf.mxu0
    %v628 = vpop.f32.mrf.mxu0
    %v629 = vadd.f32 %v534, %v628
    %v630 = vpop.f32.mrf.mxu0
    %631 = vmatprep.mubr.bf16.mxu0 0
    %632 = vmatmul.mubr.bf16.gmra.mxu0 %v509
    %v633 = vpop.f32.mrf.mxu0
    %v634 = vadd.f32 %v534, %v633
    %v635 = vpop.f32.mrf.mxu0
    %v636 = vpop.f32.mrf.mxu0
    %v637 = vadd.f32 %v534, %v636
    %v638 = vpop.f32.mrf.mxu0
    %639 = vmatprep.mubr.bf16.mxu0 0
    %640 = vmatmul.mubr.bf16.gmra.mxu0 %v510
    %v641 = vpop.f32.mrf.mxu0
    %v642 = vadd.f32 %v534, %v641
    %v643 = vpop.f32.mrf.mxu0
    %v644 = vpop.f32.mrf.mxu0
    %v645 = vadd.f32 %v534, %v644
    %v646 = vpop.f32.mrf.mxu0
    %647 = vmatprep.mubr.bf16.mxu0 0
    %648 = vmatmul.mubr.bf16.gmra.mxu0 %v511
    %v649 = vpop.f32.mrf.mxu0
    %v650 = vadd.f32 %v534, %v649
    %v651 = vpop.f32.mrf.mxu0
    %v652 = vpop.f32.mrf.mxu0
    %v653 = vadd.f32 %v534, %v652
    %v654 = vpop.f32.mrf.mxu0
    %655 = vmatprep.mubr.bf16.mxu0 0
    %656 = vmatmul.mubr.bf16.gmra.mxu0 %v512
    %v657 = vpop.f32.mrf.mxu0
    %v658 = vadd.f32 %v534, %v657
    %v659 = vpop.f32.mrf.mxu0
    %v660 = vpop.f32.mrf.mxu0
    %v661 = vadd.f32 %v534, %v660
    %v662 = vpop.f32.mrf.mxu0
    %663 = vmatprep.mubr.bf16.mxu0 0
    %664 = vmatmul.mubr.bf16.gmra.mxu0 %v513
    %v665 = vpop.f32.mrf.mxu0
    %v666 = vadd.f32 %v534, %v665
    %v667 = vpop.f32.mrf.mxu0
    %v668 = vpop.f32.mrf.mxu0
    %v669 = vadd.f32 %v534, %v668
    %v670 = vpop.f32.mrf.mxu0
    %671 = vmatprep.mubr.bf16.mxu0 0
    %672 = vmatmul.mubr.bf16.gmra.mxu0 %v514
    %v673 = vpop.f32.mrf.mxu0
    %v674 = vadd.f32 %v534, %v673
    %v675 = vpop.f32.mrf.mxu0
    %v676 = vpop.f32.mrf.mxu0
    %v677 = vadd.f32 %v534, %v676
    %v678 = vpop.f32.mrf.mxu0
    %679 = vdwg.mxu0
    %vm680 = vcmp.gt.f32.partialorder %v618, 0.0
    %vm681 = vcmp.gt.f32.partialorder %v621, 0.0
    %vm682 = vcmp.gt.f32.partialorder %v626, 0.0
    %vm683 = vcmp.gt.f32.partialorder %v629, 0.0
    %vm684 = vcmp.gt.f32.partialorder %v634, 0.0
    %vm685 = vcmp.gt.f32.partialorder %v637, 0.0
    %vm686 = vcmp.gt.f32.partialorder %v642, 0.0
    %vm687 = vcmp.gt.f32.partialorder %v645, 0.0
    %vm688 = vcmp.gt.f32.partialorder %v650, 0.0
    %vm689 = vcmp.gt.f32.partialorder %v653, 0.0
    %vm690 = vcmp.gt.f32.partialorder %v658, 0.0
    %vm691 = vcmp.gt.f32.partialorder %v661, 0.0
    %vm692 = vcmp.gt.f32.partialorder %v666, 0.0
    %vm693 = vcmp.gt.f32.partialorder %v669, 0.0
    %vm694 = vcmp.gt.f32.partialorder %v674, 0.0
    %vm695 = vcmp.gt.f32.partialorder %v677, 0.0
    %v696 = vmul.f32 %v253, %v618
    %v697 = vmul.f32 %v253, %v621
    %v698 = vmul.f32 %v253, %v626
    %v699 = vmul.f32 %v253, %v629
    %v700 = vmul.f32 %v253, %v634
    %v701 = vmul.f32 %v253, %v637
    %v702 = vmul.f32 %v253, %v642
    %v703 = vmul.f32 %v253, %v645
    %v704 = vmul.f32 %v253, %v650
    %v705 = vmul.f32 %v253, %v653
    %v706 = vmul.f32 %v253, %v658
    %v707 = vmul.f32 %v253, %v661
    %v708 = vmul.f32 %v253, %v666
    %v709 = vmul.f32 %v253, %v669
    %v710 = vmul.f32 %v253, %v674
    %v711 = vmul.f32 %v253, %v677
    %v712 = vsel %vm680, %v618, %v696
    %v713 = vsel %vm681, %v621, %v697
    %v714 = vsel %vm682, %v626, %v698
    %v715 = vsel %vm683, %v629, %v699
    %v716 = vsel %vm684, %v634, %v700
    %v717 = vsel %vm685, %v637, %v701
    %v718 = vsel %vm686, %v642, %v702
    %v719 = vsel %vm687, %v645, %v703
    %v720 = vsel %vm688, %v650, %v704
    %v721 = vsel %vm689, %v653, %v705
    %v722 = vsel %vm690, %v658, %v706
    %v723 = vsel %vm691, %v661, %v707
    %v724 = vsel %vm692, %v666, %v708
    %v725 = vsel %vm693, %v669, %v709
    %v726 = vsel %vm694, %v674, %v710
    %v727 = vsel %vm695, %v677, %v711
    %v728 = vld [vmem:[%s8] sm:$0xff]
    %v729 = vld [vmem:[%s8 + $0x8] sm:$0xff]
    %v730 = vld [vmem:[%s8 + $0x10] sm:$0xff]
    %v731 = vld [vmem:[%s8 + $0x18] sm:$0xff]
    %v732 = vld [vmem:[%s8 + $0x20] sm:$0xff]
    %v733 = vld [vmem:[%s8 + $0x28] sm:$0xff]
    %v734 = vld [vmem:[%s8 + $0x30] sm:$0xff]
    %v735 = vld [vmem:[%s8 + $0x38] sm:$0xff]
    %v736 = vld [vmem:[%s8 + $0x40] sm:$0xff]
    %v737 = vld [vmem:[%s8 + $0x48] sm:$0xff]
    %v738 = vld [vmem:[%s8 + $0x50] sm:$0xff]
    %v739 = vld [vmem:[%s8 + $0x58] sm:$0xff]
    %v740 = vld [vmem:[%s8 + $0x60] sm:$0xff]
    %v741 = vld [vmem:[%s8 + $0x68] sm:$0xff]
    %v742 = vld [vmem:[%s8 + $0x70] sm:$0xff]
    %v743 = vld [vmem:[%s8 + $0x78] sm:$0xff]
    %v744 = vlaneseq
    %v745 = vshrl.u32 %v744, 7
    %v746 = vsub.s32 0, %v745
    %v747 = vrot.slane %v94, %v746
    %748 = vmatprep.subr.mxu0 0.0
    %749 = vmatpush1.msra.mxu0 %v743
    %750 = vmatprep.subr.mxu0 0.0
    %751 = vmatpush1.msra.mxu0 %v742
    %752 = vmatprep.subr.mxu0 0.0
    %753 = vmatpush1.msra.mxu0 %v741
    %754 = vmatprep.subr.mxu0 0.0
    %755 = vmatpush1.msra.mxu0 %v740
    %756 = vmatprep.subr.mxu0 0.0
    %757 = vmatpush1.msra.mxu0 %v739
    %758 = vmatprep.subr.mxu0 0.0
    %759 = vmatpush1.msra.mxu0 %v738
    %760 = vmatprep.subr.mxu0 0.0
    %761 = vmatpush1.msra.mxu0 %v737
    %762 = vmatprep.subr.mxu0 0.0
    %763 = vmatpush1.msra.mxu0 %v736
    %764 = vmatprep.subr.mxu0 0.0
    %765 = vmatpush1.msra.mxu0 %v735
    %766 = vmatprep.subr.mxu0 0.0
    %767 = vmatpush1.msra.mxu0 %v734
    %768 = vmatprep.subr.mxu0 0.0
    %769 = vmatpush1.msra.mxu0 %v733
    %770 = vmatprep.subr.mxu0 0.0
    %771 = vmatpush1.msra.mxu0 %v732
    %772 = vmatprep.subr.mxu0 0.0
    %773 = vmatpush1.msra.mxu0 %v731
    %774 = vmatprep.subr.mxu0 0.0
    %775 = vmatpush1.msra.mxu0 %v730
    %776 = vmatprep.subr.mxu0 0.0
    %777 = vmatpush1.msra.mxu0 %v729
    %778 = vmatprep.subr.mxu0 0.0
    %779 = vmatpush1.msra.mxu0 %v728
    %780 = vmatprep.subr.mxu0 0.0
    %781 = vmatpush2.msra.mxu0 0.0
    %782 = vmatprep.subr.mxu0 0.0
    %783 = vmatpush2.msra.mxu0 0.0
    %784 = vmatprep.subr.mxu0 0.0
    %785 = vmatpush2.msra.mxu0 0.0
    %786 = vmatprep.subr.mxu0 0.0
    %787 = vmatpush2.msra.mxu0 0.0
    %788 = vmatprep.subr.mxu0 0.0
    %789 = vmatpush2.msra.mxu0 0.0
    %790 = vmatprep.subr.mxu0 0.0
    %791 = vmatpush2.msra.mxu0 0.0
    %792 = vmatprep.subr.mxu0 0.0
    %793 = vmatpush2.msra.mxu0 0.0
    %794 = vmatprep.subr.mxu0 0.0
    %795 = vmatpush2.msra.mxu0 0.0
    %796 = vmatprep.subr.mxu0 0.0
    %797 = vmatpush2.msra.mxu0 0.0
    %798 = vmatprep.subr.mxu0 0.0
    %799 = vmatpush2.msra.mxu0 0.0
    %800 = vmatprep.subr.mxu0 0.0
    %801 = vmatpush2.msra.mxu0 0.0
    %802 = vmatprep.subr.mxu0 0.0
    %803 = vmatpush2.msra.mxu0 0.0
    %804 = vmatprep.subr.mxu0 0.0
    %805 = vmatpush2.msra.mxu0 0.0
    %806 = vmatprep.subr.mxu0 0.0
    %807 = vmatpush2.msra.mxu0 0.0
    %808 = vmatprep.subr.mxu0 0.0
    %809 = vmatpush2.msra.mxu0 0.0
    %810 = vmatprep.subr.mxu0 0.0
    %811 = vmatpush2.msra.mxu0 0.0
    %812 = vmatprep.mubr.f32.mxu0 0.0
    %813 = vmatmul.mubr.f32.gmra.mxu0 %v712
    %v814 = vpop.f32.mrf.mxu0
    %v815 = vadd.f32 %v747, %v814
    %v816 = vpop.f32.mrf.mxu0
    %817 = vmatprep.mubr.f32.mxu0 0.0
    %818 = vmatmul.mubr.f32.gmra.mxu0 %v713
    %v819 = vpop.f32.mrf.mxu0
    %v820 = vadd.f32 %v747, %v819
    %v821 = vpop.f32.mrf.mxu0
    %822 = vmatprep.mubr.f32.mxu0 0.0
    %823 = vmatmul.mubr.f32.gmra.mxu0 %v714
    %v824 = vpop.f32.mrf.mxu0
    %v825 = vadd.f32 %v747, %v824
    %v826 = vpop.f32.mrf.mxu0
    %827 = vmatprep.mubr.f32.mxu0 0.0
    %828 = vmatmul.mubr.f32.gmra.mxu0 %v715
    %v829 = vpop.f32.mrf.mxu0
    %v830 = vadd.f32 %v747, %v829
    %v831 = vpop.f32.mrf.mxu0
    %832 = vmatprep.mubr.f32.mxu0 0.0
    %833 = vmatmul.mubr.f32.gmra.mxu0 %v716
    %v834 = vpop.f32.mrf.mxu0
    %v835 = vadd.f32 %v747, %v834
    %v836 = vpop.f32.mrf.mxu0
    %837 = vmatprep.mubr.f32.mxu0 0.0
    %838 = vmatmul.mubr.f32.gmra.mxu0 %v717
    %v839 = vpop.f32.mrf.mxu0
    %v840 = vadd.f32 %v747, %v839
    %v841 = vpop.f32.mrf.mxu0
    %842 = vmatprep.mubr.f32.mxu0 0.0
    %843 = vmatmul.mubr.f32.gmra.mxu0 %v718
    %v844 = vpop.f32.mrf.mxu0
    %v845 = vadd.f32 %v747, %v844
    %v846 = vpop.f32.mrf.mxu0
    %847 = vmatprep.mubr.f32.mxu0 0.0
    %848 = vmatmul.mubr.f32.gmra.mxu0 %v719
    %v849 = vpop.f32.mrf.mxu0
    %v850 = vadd.f32 %v747, %v849
    %v851 = vpop.f32.mrf.mxu0
    %852 = vmatprep.mubr.f32.mxu0 0.0
    %853 = vmatmul.mubr.f32.gmra.mxu0 %v720
    %v854 = vpop.f32.mrf.mxu0
    %v855 = vadd.f32 %v747, %v854
    %v856 = vpop.f32.mrf.mxu0
    %857 = vmatprep.mubr.f32.mxu0 0.0
    %858 = vmatmul.mubr.f32.gmra.mxu0 %v721
    %v859 = vpop.f32.mrf.mxu0
    %v860 = vadd.f32 %v747, %v859
    %v861 = vpop.f32.mrf.mxu0
    %862 = vmatprep.mubr.f32.mxu0 0.0
    %863 = vmatmul.mubr.f32.gmra.mxu0 %v722
    %v864 = vpop.f32.mrf.mxu0
    %v865 = vadd.f32 %v747, %v864
    %v866 = vpop.f32.mrf.mxu0
    %867 = vmatprep.mubr.f32.mxu0 0.0
    %868 = vmatmul.mubr.f32.gmra.mxu0 %v723
    %v869 = vpop.f32.mrf.mxu0
    %v870 = vadd.f32 %v747, %v869
    %v871 = vpop.f32.mrf.mxu0
    %872 = vmatprep.mubr.f32.mxu0 0.0
    %873 = vmatmul.mubr.f32.gmra.mxu0 %v724
    %v874 = vpop.f32.mrf.mxu0
    %v875 = vadd.f32 %v747, %v874
    %v876 = vpop.f32.mrf.mxu0
    %877 = vmatprep.mubr.f32.mxu0 0.0
    %878 = vmatmul.mubr.f32.gmra.mxu0 %v725
    %v879 = vpop.f32.mrf.mxu0
    %v880 = vadd.f32 %v747, %v879
    %v881 = vpop.f32.mrf.mxu0
    %882 = vmatprep.mubr.f32.mxu0 0.0
    %883 = vmatmul.mubr.f32.gmra.mxu0 %v726
    %v884 = vpop.f32.mrf.mxu0
    %v885 = vadd.f32 %v747, %v884
    %v886 = vpop.f32.mrf.mxu0
    %887 = vmatprep.mubr.f32.mxu0 0.0
    %888 = vmatmul.mubr.f32.gmra.mxu0 %v727
    %v889 = vpop.f32.mrf.mxu0
    %v890 = vadd.f32 %v747, %v889
    %v891 = vpop.f32.mrf.mxu0
    %892 = vdwg.mxu0
    %893 = vst [vmem:[#allocation8] sm:$0xff] %v815
    %894 = vst [vmem:[#allocation8 + $0x8] sm:$0xff] %v820
    %895 = vst [vmem:[#allocation8 + $0x10] sm:$0xff] %v825
    %896 = vst [vmem:[#allocation8 + $0x18] sm:$0xff] %v830
    %897 = vst [vmem:[#allocation8 + $0x20] sm:$0xff] %v835
    %898 = vst [vmem:[#allocation8 + $0x28] sm:$0xff] %v840
    %899 = vst [vmem:[#allocation8 + $0x30] sm:$0xff] %v845
    %900 = vst [vmem:[#allocation8 + $0x38] sm:$0xff] %v850
    %901 = vst [vmem:[#allocation8 + $0x40] sm:$0xff] %v855
    %902 = vst [vmem:[#allocation8 + $0x48] sm:$0xff] %v860
    %903 = vst [vmem:[#allocation8 + $0x50] sm:$0xff] %v865
    %904 = vst [vmem:[#allocation8 + $0x58] sm:$0xff] %v870
    %905 = vst [vmem:[#allocation8 + $0x60] sm:$0xff] %v875
    %906 = vst [vmem:[#allocation8 + $0x68] sm:$0xff] %v880
    %907 = vst [vmem:[#allocation8 + $0x70] sm:$0xff] %v885
    %908 = vst [vmem:[#allocation8 + $0x78] sm:$0xff] %v890
    // Predicated region
    $region50: #{tpu_custom_call.1} parent=1 // pred_check
      _
    $region51: #{tpu_custom_call.1} parent=1 // pred_check_branch
      %910 = sbr.rel (0) target = $region53
    $region52: #{tpu_custom_call.1} parent=1 // pred_region
      %s912 = ssub.s32 2048, 2048
      %913 = vsyncadd [#allocation5], %s912
      %s914 = sshll.u32 [#allocation8], 4
      %s915 = int_to_ptr.vmem [resolvable:$true] %s914
      %920 = dma.vmem_to_hbm [thread:$0]  %s915, 2048, %s10, [#allocation5], 128, 128, 8
    $region53: #{tpu_custom_call.1} parent=1 // pred_fallthru
      _
    // Predicated region
    $region54: #{tpu_custom_call.1} parent=1 // pred_check
      _
    $region55: #{tpu_custom_call.1} parent=1 // pred_check_branch
      %922 = sbr.rel (0) target = $region57
    $region56: #{tpu_custom_call.1} parent=1 // pred_region
      %923 = dma.done [#allocation5], 2048
    $region57: #{tpu_custom_call.1} parent=1 // pred_fallthru
      _
    %924 = vsyncpa [#allocation4], 1
    %925 = vsyncpa [#allocation7], 1
    %926 = vsyncpa [#allocation5], 1

</llo_original>
